<compile_context>
chip_gen: v7x
topology: tpu7x:2x2x1
jax: 0.10.0
libtpu: 0.0.40
codegen_flags: <defaults>
</compile_context>

<pallas_src>
import jax
import jax.numpy as jnp
from jax.experimental import pallas as pl
from jax.experimental.pallas import tpu as pltpu

LATENT_DIM = 200
HIDDEN_DIM = 400
OUTPUT_DIM = 784   # MNIST-style flattened output, as the VAE script implies
BATCH = 16

# Lane-aligned (multiple-of-128) padded dims.
LAT_P = 256
HID_P = 512
OUT_P = 896


def _round_up(n, m):
    return ((n + m - 1) // m) * m


def _pad_to(a, shape):
    pads = [(0, t - s) for s, t in zip(a.shape, shape)]
    return jnp.pad(a, pads)


def decoder_kernel(x_ref, w1_ref, b1_ref, w2_ref, b2_ref, w3_ref, b3_ref, out_ref):
    # x and weights arrive as bf16 (cast in the wrapper); f32 MXU accumulation.
    # FC_hidden + LeakyReLU(0.2)
    h = jnp.dot(x_ref[...], w1_ref[...], preferred_element_type=jnp.float32)
    h = h + b1_ref[...]
    h = jnp.where(h > 0, h, 0.2 * h)

    # FC_hidden2 + LeakyReLU(0.2)
    h = jnp.dot(h.astype(jnp.bfloat16), w2_ref[...],
                preferred_element_type=jnp.float32)
    h = h + b2_ref[...]
    h = jnp.where(h > 0, h, 0.2 * h)

    # FC_output + sigmoid
    o = jnp.dot(h.astype(jnp.bfloat16), w3_ref[...],
                preferred_element_type=jnp.float32)
    o = o + b3_ref[...]
    out_ref[...] = jax.nn.sigmoid(o).astype(out_ref.dtype)


def _pick_tm(batch):
    """Batch-tile row count.

    bf16 activations pack 16 rows per sublane tile -> 16-row floor.
    Mid-size batches get exactly two tiles so both v7x TensorCores get work
    via the "parallel" grid axis; large batches use 256-row tiles to fill the
    256-wide MXU and amortize the per-grid-step overhead.
    """
    if batch <= 32:
        return max(16, _round_up(batch, 16))
    if batch < 512:
        return _round_up(-(-batch // 2), 16)   # two even tiles
    return 256


def decoder_forward(x, w1, b1, w2, b2, w3, b3, *, out_dtype=jnp.float32, trim=True):
    """x: (B, 200) f32; weights (in, out) f32; biases (1, out) f32."""
    batch = x.shape[0]
    tm = _pick_tm(batch)
    b_pad = _round_up(batch, tm)
    n_tiles = b_pad // tm

    # Zero-pad to lane/sublane-aligned shapes; x and weights become bf16 here
    # so the kernel streams half the activation bytes and does no input casts.
    x_p = _pad_to(x, (b_pad, LAT_P)).astype(jnp.bfloat16)
    w1p = _pad_to(w1, (LAT_P, HID_P)).astype(jnp.bfloat16)
    w2p = _pad_to(w2, (HID_P, HID_P)).astype(jnp.bfloat16)
    w3p = _pad_to(w3, (HID_P, OUT_P)).astype(jnp.bfloat16)
    b1p = _pad_to(b1, (1, HID_P))
    b2p = _pad_to(b2, (1, HID_P))
    b3p = _pad_to(b3, (1, OUT_P))

    out_bytes = b_pad * OUT_P * jnp.dtype(out_dtype).itemsize
    cost = pl.CostEstimate(
        flops=2 * b_pad * (LAT_P * HID_P + HID_P * HID_P + HID_P * OUT_P),
        transcendentals=b_pad * OUT_P,
        # Weights counted once: their blocks are pinned, so they are DMA'd a
        # single time per call regardless of n_tiles.
        bytes_accessed=(
            2 * (LAT_P * HID_P + HID_P * HID_P + HID_P * OUT_P)   # bf16 weights
            + 4 * (2 * HID_P + OUT_P)                             # f32 biases
            + 2 * b_pad * LAT_P                                   # bf16 x
            + out_bytes                                           # output
        ),
    )

    out_shape = jax.ShapeDtypeStruct((b_pad, OUT_P), out_dtype)
    args = (x_p, w1p, b1p, w2p, b2p, w3p, b3p)

    if n_tiles == 1:
        # Single tile: skip the grid/pipeline entirely. Whole padded operands
        # are resident in VMEM and the kernel runs exactly once.
        out_p = pl.pallas_call(
            decoder_kernel,
            out_shape=out_shape,
            compiler_params=pltpu.CompilerParams(vmem_limit_bytes=16 << 20),
            cost_estimate=cost,
        )(*args)
    else:
        # Batch tiles stream; weight/bias blocks are pinned at block (0, 0)
        # so Pallas keeps them VMEM-resident and skips their re-DMA.
        pin = lambda shape: pl.BlockSpec(shape, lambda i: (0, 0))
        out_p = pl.pallas_call(
            decoder_kernel,
            out_shape=out_shape,
            grid=(n_tiles,),
            in_specs=[
                pl.BlockSpec((tm, LAT_P), lambda i: (i, 0)),   # x tiles stream
                pin((LAT_P, HID_P)),
                pin((1, HID_P)),
                pin((HID_P, HID_P)),
                pin((1, HID_P)),
                pin((HID_P, OUT_P)),
                pin((1, OUT_P)),
            ],
            out_specs=pl.BlockSpec((tm, OUT_P), lambda i: (i, 0)),
            compiler_params=pltpu.CompilerParams(
                dimension_semantics=("parallel",),
                vmem_limit_bytes=16 << 20,
            ),
            cost_estimate=cost,
        )(*args)

    if trim:
        # Strip batch and lane padding back to the logical output shape.
        # (Pass trim=False to consume the padded slab and avoid this copy.)
        return out_p[:batch, :OUTPUT_DIM]
    return out_p


decoder_forward_jit = jax.jit(decoder_forward, static_argnames=("out_dtype", "trim"))


def init_params(key):
    """Deterministic init mimicking nn.Linear's U(-1/sqrt(fan_in), +1/sqrt(fan_in))."""
    ks = jax.random.split(key, 6)

    def linear(kw, kb, fan_in, fan_out):
        bound = 1.0 / jnp.sqrt(jnp.float32(fan_in))
        w = jax.random.uniform(kw, (fan_in, fan_out), jnp.float32, -bound, bound)
        b = jax.random.uniform(kb, (1, fan_out), jnp.float32, -bound, bound)
        return w, b

    w1, b1 = linear(ks[0], ks[1], LATENT_DIM, HIDDEN_DIM)
    w2, b2 = linear(ks[2], ks[3], HIDDEN_DIM, HIDDEN_DIM)
    w3, b3 = linear(ks[4], ks[5], HIDDEN_DIM, OUTPUT_DIM)
    return w1, b1, w2, b2, w3, b3


def reference_forward(x, w1, b1, w2, b2, w3, b3):
    leaky = lambda v: jnp.where(v > 0, v, 0.2 * v)
    h = leaky(x @ w1 + b1)
    h = leaky(h @ w2 + b2)
    return jax.nn.sigmoid(h @ w3 + b3)


if __name__ == "__main__":
    key = jax.random.PRNGKey(0)
    k_x, k_p = jax.random.split(key)

    params = init_params(k_p)

    # Small-batch path (single tile, no grid/pipeline).
    x_small = jax.random.normal(k_x, (BATCH, LATENT_DIM), jnp.float32)
    out_small = jax.block_until_ready(decoder_forward_jit(x_small, *params))
    ref_small = reference_forward(x_small, *params)
    assert out_small.shape == (BATCH, OUTPUT_DIM), out_small.shape
    # Looser tolerance than f32: bf16 matmul inputs (f32 accumulation).
    assert jnp.allclose(out_small, ref_small, atol=2e-2, rtol=2e-2), \
        "small-batch mismatch vs JAX reference"

    # Multi-tile batch-parallel path (2 tiles -> exercises the streaming grid
    # and, on v7x, both TensorCores).
    x_big = jax.random.normal(k_x, (96, LATENT_DIM), jnp.float32)
    out_big = jax.block_until_ready(decoder_forward_jit(x_big, *params))
    ref_big = reference_forward(x_big, *params)
    assert out_big.shape == (96, OUTPUT_DIM), out_big.shape
    assert jnp.allclose(out_big, ref_big, atol=2e-2, rtol=2e-2), \
        "multi-tile mismatch vs JAX reference"

    print("KERNEL_OK")
</pallas_src>

<mosaic_0001>
module attributes {stable_mosaic.version = 11 : i64} {
  func.func @decoder_kernel(%arg0: memref<16x256xbf16, #tpu.memory_space<vmem>>, %arg1: memref<256x512xbf16, #tpu.memory_space<vmem>>, %arg2: memref<1x512xf32, #tpu.memory_space<vmem>>, %arg3: memref<512x512xbf16, #tpu.memory_space<vmem>>, %arg4: memref<1x512xf32, #tpu.memory_space<vmem>>, %arg5: memref<512x896xbf16, #tpu.memory_space<vmem>>, %arg6: memref<1x896xf32, #tpu.memory_space<vmem>>, %arg7: memref<16x896xf32, #tpu.memory_space<vmem>>) attributes {dimension_semantics = [], scalar_prefetch = 0 : i64, scratch_operands = 0 : i64, tpu.core_type = #tpu.core_type<tc>} {
    %c0 = arith.constant 0 : index
    %c0_0 = arith.constant 0 : index
    %0 = vector.load %arg0[%c0, %c0_0] : memref<16x256xbf16, #tpu.memory_space<vmem>>, vector<16x256xbf16>
    %c0_1 = arith.constant 0 : index
    %c0_2 = arith.constant 0 : index
    %1 = vector.load %arg1[%c0_1, %c0_2] : memref<256x512xbf16, #tpu.memory_space<vmem>>, vector<256x512xbf16>
    %cst = arith.constant dense<0.000000e+00> : vector<16x512xf32>
    %2 = tpu.matmul %0, %1, %cst {dimension_numbers = #tpu.dot_dimension_numbers<[1], [0], [0], [1], [0, 0, 1, 1], [], []>} : vector<16x256xbf16>, vector<256x512xbf16>, vector<16x512xf32> -> vector<16x512xf32>
    %c0_3 = arith.constant 0 : index
    %c0_4 = arith.constant 0 : index
    %3 = vector.load %arg2[%c0_3, %c0_4] : memref<1x512xf32, #tpu.memory_space<vmem>>, vector<1x512xf32>
    %4 = vector.broadcast %3 : vector<1x512xf32> to vector<16x512xf32>
    %5 = arith.addf %2, %4 : vector<16x512xf32>
    %cst_5 = arith.constant 0.000000e+00 : f32
    %6 = vector.broadcast %cst_5 : f32 to vector<16x512xf32>
    %7 = arith.cmpf ogt, %5, %6 : vector<16x512xf32>
    %cst_6 = arith.constant 2.000000e-01 : f32
    %8 = vector.broadcast %cst_6 : f32 to vector<16x512xf32>
    %9 = arith.mulf %8, %5 : vector<16x512xf32>
    %10 = arith.select %7, %5, %9 : vector<16x512xi1>, vector<16x512xf32>
    %11 = arith.truncf %10 : vector<16x512xf32> to vector<16x512xbf16>
    %c0_7 = arith.constant 0 : index
    %c0_8 = arith.constant 0 : index
    %12 = vector.load %arg3[%c0_7, %c0_8] : memref<512x512xbf16, #tpu.memory_space<vmem>>, vector<512x512xbf16>
    %cst_9 = arith.constant dense<0.000000e+00> : vector<16x512xf32>
    %13 = tpu.matmul %11, %12, %cst_9 {dimension_numbers = #tpu.dot_dimension_numbers<[1], [0], [0], [1], [0, 0, 1, 1], [], []>} : vector<16x512xbf16>, vector<512x512xbf16>, vector<16x512xf32> -> vector<16x512xf32>
    %c0_10 = arith.constant 0 : index
    %c0_11 = arith.constant 0 : index
    %14 = vector.load %arg4[%c0_10, %c0_11] : memref<1x512xf32, #tpu.memory_space<vmem>>, vector<1x512xf32>
    %15 = vector.broadcast %14 : vector<1x512xf32> to vector<16x512xf32>
    %16 = arith.addf %13, %15 : vector<16x512xf32>
    %cst_12 = arith.constant 0.000000e+00 : f32
    %17 = vector.broadcast %cst_12 : f32 to vector<16x512xf32>
    %18 = arith.cmpf ogt, %16, %17 : vector<16x512xf32>
    %cst_13 = arith.constant 2.000000e-01 : f32
    %19 = vector.broadcast %cst_13 : f32 to vector<16x512xf32>
    %20 = arith.mulf %19, %16 : vector<16x512xf32>
    %21 = arith.select %18, %16, %20 : vector<16x512xi1>, vector<16x512xf32>
    %22 = arith.truncf %21 : vector<16x512xf32> to vector<16x512xbf16>
    %c0_14 = arith.constant 0 : index
    %c0_15 = arith.constant 0 : index
    %23 = vector.load %arg5[%c0_14, %c0_15] : memref<512x896xbf16, #tpu.memory_space<vmem>>, vector<512x896xbf16>
    %cst_16 = arith.constant dense<0.000000e+00> : vector<16x896xf32>
    %24 = tpu.matmul %22, %23, %cst_16 {dimension_numbers = #tpu.dot_dimension_numbers<[1], [0], [0], [1], [0, 0, 1, 1], [], []>} : vector<16x512xbf16>, vector<512x896xbf16>, vector<16x896xf32> -> vector<16x896xf32>
    %c0_17 = arith.constant 0 : index
    %c0_18 = arith.constant 0 : index
    %25 = vector.load %arg6[%c0_17, %c0_18] : memref<1x896xf32, #tpu.memory_space<vmem>>, vector<1x896xf32>
    %26 = vector.broadcast %25 : vector<1x896xf32> to vector<16x896xf32>
    %27 = arith.addf %24, %26 : vector<16x896xf32>
    %28 = arith.negf %27 : vector<16x896xf32>
    %29 = math.exp %28 : vector<16x896xf32>
    %cst_19 = arith.constant 1.000000e+00 : f32
    %30 = vector.broadcast %cst_19 : f32 to vector<16x896xf32>
    %31 = arith.addf %30, %29 : vector<16x896xf32>
    %32 = arith.divf %30, %31 : vector<16x896xf32>
    %c0_20 = arith.constant 0 : index
    %c0_21 = arith.constant 0 : index
    %33 = vector.load %arg7[%c0_20, %c0_21] : memref<16x896xf32, #tpu.memory_space<vmem>>, vector<16x896xf32>
    tpu.vector_store %arg7[%c0_20, %c0_21], %32 {strides = array<i32>} : memref<16x896xf32, #tpu.memory_space<vmem>>, vector<16x896xf32>,
    return
  }
}

</mosaic_0001>

<llo_original>
// kernel: decoder_forward.1
$region0: #{decoder_forward.1}
  #allocation0 [shape = 'u32[]', space=smem, size = 0x4, offset = 0x4, fixed_abs, tag = 'smem constant byte address 0x4 - core index']
  #allocation1 [shape = 'u32[144,128]{1,0:T(1,128)}', space=vmem, size = 0x12000, scoped, tag = 'internal scratch']
  %s0 = inlined_call_operand.vmem [shape: bf16[16,256], index: 0, kind: input, shape index: {}]
  %s1 = inlined_call_operand.vmem [shape: bf16[256,512], index: 1, kind: input, shape index: {}]
  %s2 = inlined_call_operand.vmem [shape: f32[1,512], index: 2, kind: input, shape index: {}]
  %s3 = inlined_call_operand.vmem [shape: bf16[512,512], index: 3, kind: input, shape index: {}]
  %s4 = inlined_call_operand.vmem [shape: f32[1,512], index: 4, kind: input, shape index: {}]
  %s5 = inlined_call_operand.vmem [shape: bf16[512,896], index: 5, kind: input, shape index: {}]
  %s6 = inlined_call_operand.vmem [shape: f32[1,896], index: 6, kind: input, shape index: {}]
  %s7 = inlined_call_operand.hbm [shape: f32[16,896], index: 7, kind: output, shape index: {}]
  %s8 = sld [smem:[#allocation0]]
  $region38: #{decoder_forward.1} parent=0
    _
  %s10 = ssub.s32 1, %s8
  %s11 = scalar_select 0, %s10, %s8
  $region1: #{decoder_forward.1} parent=0
    #allocation2 [shape = 'u8[57344]{0}', space=vmem, size = 0xe000, scoped, tag = 'output window, operand 0, single buffered']
    #allocation3 [shape = 's32[1]{0}', space=sflag, size = 0x4, scoped, tag = 'scoped memory for decoder_forward.1']
    %12 = vsyncpa [#allocation3], 0
    // Predicated region
    $region2: #{decoder_forward.1} parent=1 // pred_check
      _
    $region3: #{decoder_forward.1} parent=1 // pred_check_branch
      %14 = sbr.rel (0) target = $region5
    $region4: #{decoder_forward.1} parent=1 // pred_region
      _
    $region5: #{decoder_forward.1} parent=1 // pred_fallthru
      _
    // Predicated region
    $region6: #{decoder_forward.1} parent=1 // pred_check
      _
    $region7: #{decoder_forward.1} parent=1 // pred_check_branch
      %16 = sbr.rel (0) target = $region9
    $region8: #{decoder_forward.1} parent=1 // pred_region
      _
    $region9: #{decoder_forward.1} parent=1 // pred_fallthru
      _
    // Predicated region
    $region10: #{decoder_forward.1} parent=1 // pred_check
      _
    $region11: #{decoder_forward.1} parent=1 // pred_check_branch
      %18 = sbr.rel (0) target = $region13
    $region12: #{decoder_forward.1} parent=1 // pred_region
      _
    $region13: #{decoder_forward.1} parent=1 // pred_fallthru
      _
    // Predicated region
    $region14: #{decoder_forward.1} parent=1 // pred_check
      _
    $region15: #{decoder_forward.1} parent=1 // pred_check_branch
      %20 = sbr.rel (0) target = $region17
    $region16: #{decoder_forward.1} parent=1 // pred_region
      _
    $region17: #{decoder_forward.1} parent=1 // pred_fallthru
      _
    // Predicated region
    $region18: #{decoder_forward.1} parent=1 // pred_check
      _
    $region19: #{decoder_forward.1} parent=1 // pred_check_branch
      %22 = sbr.rel (0) target = $region21
    $region20: #{decoder_forward.1} parent=1 // pred_region
      _
    $region21: #{decoder_forward.1} parent=1 // pred_fallthru
      _
    // Predicated region
    $region22: #{decoder_forward.1} parent=1 // pred_check
      _
    $region23: #{decoder_forward.1} parent=1 // pred_check_branch
      %24 = sbr.rel (0) target = $region25
    $region24: #{decoder_forward.1} parent=1 // pred_region
      _
    $region25: #{decoder_forward.1} parent=1 // pred_fallthru
      _
    // Predicated region
    $region26: #{decoder_forward.1} parent=1 // pred_check
      _
    $region27: #{decoder_forward.1} parent=1 // pred_check_branch
      %26 = sbr.rel (0) target = $region29
    $region28: #{decoder_forward.1} parent=1 // pred_region
      _
    $region29: #{decoder_forward.1} parent=1 // pred_fallthru
      _
    %v28 = vld [vmem:[%s0] sm:$0xff]
    %v29 = vld [vmem:[%s0 + $0x8] sm:$0xff]
    %v30 = vld [vmem:[%s1] sm:$0xff]
    %v31 = vld [vmem:[%s1 + $0x8] sm:$0xff]
    %v32 = vld [vmem:[%s1 + $0x10] sm:$0xff]
    %v33 = vld [vmem:[%s1 + $0x18] sm:$0xff]
    %v34 = vld [vmem:[%s1 + $0x20] sm:$0xff]
    %v35 = vld [vmem:[%s1 + $0x28] sm:$0xff]
    %v36 = vld [vmem:[%s1 + $0x30] sm:$0xff]
    %v37 = vld [vmem:[%s1 + $0x38] sm:$0xff]
    %v38 = vld [vmem:[%s1 + $0x40] sm:$0xff]
    %v39 = vld [vmem:[%s1 + $0x48] sm:$0xff]
    %v40 = vld [vmem:[%s1 + $0x50] sm:$0xff]
    %v41 = vld [vmem:[%s1 + $0x58] sm:$0xff]
    %v42 = vld [vmem:[%s1 + $0x60] sm:$0xff]
    %v43 = vld [vmem:[%s1 + $0x68] sm:$0xff]
    %v44 = vld [vmem:[%s1 + $0x70] sm:$0xff]
    %v45 = vld [vmem:[%s1 + $0x78] sm:$0xff]
    %v46 = vld [vmem:[%s1 + $0x80] sm:$0xff]
    %v47 = vld [vmem:[%s1 + $0x88] sm:$0xff]
    %v48 = vld [vmem:[%s1 + $0x90] sm:$0xff]
    %v49 = vld [vmem:[%s1 + $0x98] sm:$0xff]
    %v50 = vld [vmem:[%s1 + $0xa0] sm:$0xff]
    %v51 = vld [vmem:[%s1 + $0xa8] sm:$0xff]
    %v52 = vld [vmem:[%s1 + $0xb0] sm:$0xff]
    %v53 = vld [vmem:[%s1 + $0xb8] sm:$0xff]
    %v54 = vld [vmem:[%s1 + $0xc0] sm:$0xff]
    %v55 = vld [vmem:[%s1 + $0xc8] sm:$0xff]
    %v56 = vld [vmem:[%s1 + $0xd0] sm:$0xff]
    %v57 = vld [vmem:[%s1 + $0xd8] sm:$0xff]
    %v58 = vld [vmem:[%s1 + $0xe0] sm:$0xff]
    %v59 = vld [vmem:[%s1 + $0xe8] sm:$0xff]
    %v60 = vld [vmem:[%s1 + $0xf0] sm:$0xff]
    %v61 = vld [vmem:[%s1 + $0xf8] sm:$0xff]
    %v62 = vld [vmem:[%s1 + $0x100] sm:$0xff]
    %v63 = vld [vmem:[%s1 + $0x108] sm:$0xff]
    %v64 = vld [vmem:[%s1 + $0x110] sm:$0xff]
    %v65 = vld [vmem:[%s1 + $0x118] sm:$0xff]
    %v66 = vld [vmem:[%s1 + $0x120] sm:$0xff]
    %v67 = vld [vmem:[%s1 + $0x128] sm:$0xff]
    %v68 = vld [vmem:[%s1 + $0x130] sm:$0xff]
    %v69 = vld [vmem:[%s1 + $0x138] sm:$0xff]
    %v70 = vld [vmem:[%s1 + $0x140] sm:$0xff]
    %v71 = vld [vmem:[%s1 + $0x148] sm:$0xff]
    %v72 = vld [vmem:[%s1 + $0x150] sm:$0xff]
    %v73 = vld [vmem:[%s1 + $0x158] sm:$0xff]
    %v74 = vld [vmem:[%s1 + $0x160] sm:$0xff]
    %v75 = vld [vmem:[%s1 + $0x168] sm:$0xff]
    %v76 = vld [vmem:[%s1 + $0x170] sm:$0xff]
    %v77 = vld [vmem:[%s1 + $0x178] sm:$0xff]
    %v78 = vld [vmem:[%s1 + $0x180] sm:$0xff]
    %v79 = vld [vmem:[%s1 + $0x188] sm:$0xff]
    %v80 = vld [vmem:[%s1 + $0x190] sm:$0xff]
    %v81 = vld [vmem:[%s1 + $0x198] sm:$0xff]
    %v82 = vld [vmem:[%s1 + $0x1a0] sm:$0xff]
    %v83 = vld [vmem:[%s1 + $0x1a8] sm:$0xff]
    %v84 = vld [vmem:[%s1 + $0x1b0] sm:$0xff]
    %v85 = vld [vmem:[%s1 + $0x1b8] sm:$0xff]
    %v86 = vld [vmem:[%s1 + $0x1c0] sm:$0xff]
    %v87 = vld [vmem:[%s1 + $0x1c8] sm:$0xff]
    %v88 = vld [vmem:[%s1 + $0x1d0] sm:$0xff]
    %v89 = vld [vmem:[%s1 + $0x1d8] sm:$0xff]
    %v90 = vld [vmem:[%s1 + $0x1e0] sm:$0xff]
    %v91 = vld [vmem:[%s1 + $0x1e8] sm:$0xff]
    %v92 = vld [vmem:[%s1 + $0x1f0] sm:$0xff]
    %v93 = vld [vmem:[%s1 + $0x1f8] sm:$0xff]
    %v94 = vld [vmem:[%s2] sm:$0xf]
    %v96 = vlaneseq
    %v97 = vshrl.u32 %v96, 7
    %v98 = vsub.s32 0, %v97
    %v99 = vrot.slane %v94, %v98
    %v100 = vlaneseq
    %v101 = vshrl.u32 %v100, 7
    %v102 = vsub.s32 1, %v101
    %v103 = vrot.slane %v94, %v102
    %v104 = vlaneseq
    %v105 = vshrl.u32 %v104, 7
    %v106 = vsub.s32 2, %v105
    %v107 = vrot.slane %v94, %v106
    %v108 = vlaneseq
    %v109 = vshrl.u32 %v108, 7
    %v110 = vsub.s32 3, %v109
    %v111 = vrot.slane %v94, %v110
    %v118 = vunpack.c.l.b16 %v28
    %v119 = vunpack.c.h.b16 %v28
    %v120 = vunpack.c.l.b16 %v29
    %v121 = vunpack.c.h.b16 %v29
    %v122 = vpack.c.b16 %v120, %v118
    %v123 = vpack.c.b16 %v121, %v119
    %v190 = vunpack.c.l.b16 %v30
    %v191 = vunpack.c.h.b16 %v30
    %v192 = vunpack.c.l.b16 %v31
    %v193 = vunpack.c.h.b16 %v31
    %v194 = vunpack.c.l.b16 %v32
    %v195 = vunpack.c.h.b16 %v32
    %v196 = vunpack.c.l.b16 %v33
    %v197 = vunpack.c.h.b16 %v33
    %v198 = vunpack.c.l.b16 %v34
    %v199 = vunpack.c.h.b16 %v34
    %v200 = vunpack.c.l.b16 %v35
    %v201 = vunpack.c.h.b16 %v35
    %v202 = vunpack.c.l.b16 %v36
    %v203 = vunpack.c.h.b16 %v36
    %v204 = vunpack.c.l.b16 %v37
    %v205 = vunpack.c.h.b16 %v37
    %v206 = vunpack.c.l.b16 %v38
    %v207 = vunpack.c.h.b16 %v38
    %v208 = vunpack.c.l.b16 %v39
    %v209 = vunpack.c.h.b16 %v39
    %v210 = vunpack.c.l.b16 %v40
    %v211 = vunpack.c.h.b16 %v40
    %v212 = vunpack.c.l.b16 %v41
    %v213 = vunpack.c.h.b16 %v41
    %v214 = vunpack.c.l.b16 %v42
    %v215 = vunpack.c.h.b16 %v42
    %v216 = vunpack.c.l.b16 %v43
    %v217 = vunpack.c.h.b16 %v43
    %v218 = vunpack.c.l.b16 %v44
    %v219 = vunpack.c.h.b16 %v44
    %v220 = vunpack.c.l.b16 %v45
    %v221 = vunpack.c.h.b16 %v45
    %v222 = vunpack.c.l.b16 %v46
    %v223 = vunpack.c.h.b16 %v46
    %v224 = vunpack.c.l.b16 %v47
    %v225 = vunpack.c.h.b16 %v47
    %v226 = vunpack.c.l.b16 %v48
    %v227 = vunpack.c.h.b16 %v48
    %v228 = vunpack.c.l.b16 %v49
    %v229 = vunpack.c.h.b16 %v49
    %v230 = vunpack.c.l.b16 %v50
    %v231 = vunpack.c.h.b16 %v50
    %v232 = vunpack.c.l.b16 %v51
    %v233 = vunpack.c.h.b16 %v51
    %v234 = vunpack.c.l.b16 %v52
    %v235 = vunpack.c.h.b16 %v52
    %v236 = vunpack.c.l.b16 %v53
    %v237 = vunpack.c.h.b16 %v53
    %v238 = vunpack.c.l.b16 %v54
    %v239 = vunpack.c.h.b16 %v54
    %v240 = vunpack.c.l.b16 %v55
    %v241 = vunpack.c.h.b16 %v55
    %v242 = vunpack.c.l.b16 %v56
    %v243 = vunpack.c.h.b16 %v56
    %v244 = vunpack.c.l.b16 %v57
    %v245 = vunpack.c.h.b16 %v57
    %v246 = vunpack.c.l.b16 %v58
    %v247 = vunpack.c.h.b16 %v58
    %v248 = vunpack.c.l.b16 %v59
    %v249 = vunpack.c.h.b16 %v59
    %v250 = vunpack.c.l.b16 %v60
    %v251 = vunpack.c.h.b16 %v60
    %v252 = vunpack.c.l.b16 %v61
    %v253 = vunpack.c.h.b16 %v61
    %v254 = vunpack.c.l.b16 %v62
    %v255 = vunpack.c.h.b16 %v62
    %v256 = vunpack.c.l.b16 %v63
    %v257 = vunpack.c.h.b16 %v63
    %v258 = vunpack.c.l.b16 %v64
    %v259 = vunpack.c.h.b16 %v64
    %v260 = vunpack.c.l.b16 %v65
    %v261 = vunpack.c.h.b16 %v65
    %v262 = vunpack.c.l.b16 %v66
    %v263 = vunpack.c.h.b16 %v66
    %v264 = vunpack.c.l.b16 %v67
    %v265 = vunpack.c.h.b16 %v67
    %v266 = vunpack.c.l.b16 %v68
    %v267 = vunpack.c.h.b16 %v68
    %v268 = vunpack.c.l.b16 %v69
    %v269 = vunpack.c.h.b16 %v69
    %v270 = vunpack.c.l.b16 %v70
    %v271 = vunpack.c.h.b16 %v70
    %v272 = vunpack.c.l.b16 %v71
    %v273 = vunpack.c.h.b16 %v71
    %v274 = vunpack.c.l.b16 %v72
    %v275 = vunpack.c.h.b16 %v72
    %v276 = vunpack.c.l.b16 %v73
    %v277 = vunpack.c.h.b16 %v73
    %v278 = vunpack.c.l.b16 %v74
    %v279 = vunpack.c.h.b16 %v74
    %v280 = vunpack.c.l.b16 %v75
    %v281 = vunpack.c.h.b16 %v75
    %v282 = vunpack.c.l.b16 %v76
    %v283 = vunpack.c.h.b16 %v76
    %v284 = vunpack.c.l.b16 %v77
    %v285 = vunpack.c.h.b16 %v77
    %v286 = vunpack.c.l.b16 %v78
    %v287 = vunpack.c.h.b16 %v78
    %v288 = vunpack.c.l.b16 %v79
    %v289 = vunpack.c.h.b16 %v79
    %v290 = vunpack.c.l.b16 %v80
    %v291 = vunpack.c.h.b16 %v80
    %v292 = vunpack.c.l.b16 %v81
    %v293 = vunpack.c.h.b16 %v81
    %v294 = vunpack.c.l.b16 %v82
    %v295 = vunpack.c.h.b16 %v82
    %v296 = vunpack.c.l.b16 %v83
    %v297 = vunpack.c.h.b16 %v83
    %v298 = vunpack.c.l.b16 %v84
    %v299 = vunpack.c.h.b16 %v84
    %v300 = vunpack.c.l.b16 %v85
    %v301 = vunpack.c.h.b16 %v85
    %v302 = vunpack.c.l.b16 %v86
    %v303 = vunpack.c.h.b16 %v86
    %v304 = vunpack.c.l.b16 %v87
    %v305 = vunpack.c.h.b16 %v87
    %v306 = vunpack.c.l.b16 %v88
    %v307 = vunpack.c.h.b16 %v88
    %v308 = vunpack.c.l.b16 %v89
    %v309 = vunpack.c.h.b16 %v89
    %v310 = vunpack.c.l.b16 %v90
    %v311 = vunpack.c.h.b16 %v90
    %v312 = vunpack.c.l.b16 %v91
    %v313 = vunpack.c.h.b16 %v91
    %v314 = vunpack.c.l.b16 %v92
    %v315 = vunpack.c.h.b16 %v92
    %v316 = vunpack.c.l.b16 %v93
    %v317 = vunpack.c.h.b16 %v93
    %v318 = vpack.c.b16 %v194, %v190
    %v319 = vpack.c.b16 %v195, %v191
    %v320 = vpack.c.b16 %v196, %v192
    %v321 = vpack.c.b16 %v197, %v193
    %v322 = vpack.c.b16 %v202, %v198
    %v323 = vpack.c.b16 %v203, %v199
    %v324 = vpack.c.b16 %v204, %v200
    %v325 = vpack.c.b16 %v205, %v201
    %v326 = vpack.c.b16 %v210, %v206
    %v327 = vpack.c.b16 %v211, %v207
    %v328 = vpack.c.b16 %v212, %v208
    %v329 = vpack.c.b16 %v213, %v209
    %v330 = vpack.c.b16 %v218, %v214
    %v331 = vpack.c.b16 %v219, %v215
    %v332 = vpack.c.b16 %v220, %v216
    %v333 = vpack.c.b16 %v221, %v217
    %v334 = vpack.c.b16 %v226, %v222
    %v335 = vpack.c.b16 %v227, %v223
    %v336 = vpack.c.b16 %v228, %v224
    %v337 = vpack.c.b16 %v229, %v225
    %v338 = vpack.c.b16 %v234, %v230
    %v339 = vpack.c.b16 %v235, %v231
    %v340 = vpack.c.b16 %v236, %v232
    %v341 = vpack.c.b16 %v237, %v233
    %v342 = vpack.c.b16 %v242, %v238
    %v343 = vpack.c.b16 %v243, %v239
    %v344 = vpack.c.b16 %v244, %v240
    %v345 = vpack.c.b16 %v245, %v241
    %v346 = vpack.c.b16 %v250, %v246
    %v347 = vpack.c.b16 %v251, %v247
    %v348 = vpack.c.b16 %v252, %v248
    %v349 = vpack.c.b16 %v253, %v249
    %v350 = vpack.c.b16 %v258, %v254
    %v351 = vpack.c.b16 %v259, %v255
    %v352 = vpack.c.b16 %v260, %v256
    %v353 = vpack.c.b16 %v261, %v257
    %v354 = vpack.c.b16 %v266, %v262
    %v355 = vpack.c.b16 %v267, %v263
    %v356 = vpack.c.b16 %v268, %v264
    %v357 = vpack.c.b16 %v269, %v265
    %v358 = vpack.c.b16 %v274, %v270
    %v359 = vpack.c.b16 %v275, %v271
    %v360 = vpack.c.b16 %v276, %v272
    %v361 = vpack.c.b16 %v277, %v273
    %v362 = vpack.c.b16 %v282, %v278
    %v363 = vpack.c.b16 %v283, %v279
    %v364 = vpack.c.b16 %v284, %v280
    %v365 = vpack.c.b16 %v285, %v281
    %v366 = vpack.c.b16 %v290, %v286
    %v367 = vpack.c.b16 %v291, %v287
    %v368 = vpack.c.b16 %v292, %v288
    %v369 = vpack.c.b16 %v293, %v289
    %v370 = vpack.c.b16 %v298, %v294
    %v371 = vpack.c.b16 %v299, %v295
    %v372 = vpack.c.b16 %v300, %v296
    %v373 = vpack.c.b16 %v301, %v297
    %v374 = vpack.c.b16 %v306, %v302
    %v375 = vpack.c.b16 %v307, %v303
    %v376 = vpack.c.b16 %v308, %v304
    %v377 = vpack.c.b16 %v309, %v305
    %v378 = vpack.c.b16 %v314, %v310
    %v379 = vpack.c.b16 %v315, %v311
    %v380 = vpack.c.b16 %v316, %v312
    %v381 = vpack.c.b16 %v317, %v313
    %446 = vmatprep.subr.bf16.mxu0 %v319
    %447 = vmatpush1.bf16.msra.mxu0 %v318
    %448 = vmatprep.subr.bf16.mxu0 %v323
    %449 = vmatpush1.bf16.msra.mxu0 %v322
    %450 = vmatprep.subr.bf16.mxu0 %v327
    %451 = vmatpush1.bf16.msra.mxu0 %v326
    %452 = vmatprep.subr.bf16.mxu0 %v331
    %453 = vmatpush1.bf16.msra.mxu0 %v330
    %454 = vmatprep.subr.bf16.mxu0 %v335
    %455 = vmatpush1.bf16.msra.mxu0 %v334
    %456 = vmatprep.subr.bf16.mxu0 %v339
    %457 = vmatpush1.bf16.msra.mxu0 %v338
    %458 = vmatprep.subr.bf16.mxu0 %v343
    %459 = vmatpush1.bf16.msra.mxu0 %v342
    %460 = vmatprep.subr.bf16.mxu0 %v347
    %461 = vmatpush1.bf16.msra.mxu0 %v346
    %462 = vmatprep.subr.bf16.mxu0 %v351
    %463 = vmatpush1.bf16.msra.mxu0 %v350
    %464 = vmatprep.subr.bf16.mxu0 %v355
    %465 = vmatpush1.bf16.msra.mxu0 %v354
    %466 = vmatprep.subr.bf16.mxu0 %v359
    %467 = vmatpush1.bf16.msra.mxu0 %v358
    %468 = vmatprep.subr.bf16.mxu0 %v363
    %469 = vmatpush1.bf16.msra.mxu0 %v362
    %470 = vmatprep.subr.bf16.mxu0 %v367
    %471 = vmatpush1.bf16.msra.mxu0 %v366
    %472 = vmatprep.subr.bf16.mxu0 %v371
    %473 = vmatpush1.bf16.msra.mxu0 %v370
    %474 = vmatprep.subr.bf16.mxu0 %v375
    %475 = vmatpush1.bf16.msra.mxu0 %v374
    %476 = vmatprep.subr.bf16.mxu0 %v379
    %477 = vmatpush1.bf16.msra.mxu0 %v378
    %478 = vmatprep.mubr.bf16.mxu0 %v123
    %479 = vmatmul.mubr.bf16.gmra.mrb[0].mxu0 %v122
    %v480 = vpop.f32.mrb[0].mxu0
    %v481 = vadd.f32 %v99, %v480
    %v482 = vpop.f32.mrb[0].mxu0
    %v483 = vadd.f32 %v103, %v482
    %v484 = vpop.f32.mrb[0].mxu0
    %v485 = vadd.f32 %v99, %v484
    %v486 = vpop.f32.mrb[0].mxu0
    %v487 = vadd.f32 %v103, %v486
    %488 = vdwg.mxu0
    %489 = vmatprep.subr.bf16.mxu0 %v321
    %490 = vmatpush1.bf16.msra.mxu0 %v320
    %491 = vmatprep.subr.bf16.mxu0 %v325
    %492 = vmatpush1.bf16.msra.mxu0 %v324
    %493 = vmatprep.subr.bf16.mxu0 %v329
    %494 = vmatpush1.bf16.msra.mxu0 %v328
    %495 = vmatprep.subr.bf16.mxu0 %v333
    %496 = vmatpush1.bf16.msra.mxu0 %v332
    %497 = vmatprep.subr.bf16.mxu0 %v337
    %498 = vmatpush1.bf16.msra.mxu0 %v336
    %499 = vmatprep.subr.bf16.mxu0 %v341
    %500 = vmatpush1.bf16.msra.mxu0 %v340
    %501 = vmatprep.subr.bf16.mxu0 %v345
    %502 = vmatpush1.bf16.msra.mxu0 %v344
    %503 = vmatprep.subr.bf16.mxu0 %v349
    %504 = vmatpush1.bf16.msra.mxu0 %v348
    %505 = vmatprep.subr.bf16.mxu0 %v353
    %506 = vmatpush1.bf16.msra.mxu0 %v352
    %507 = vmatprep.subr.bf16.mxu0 %v357
    %508 = vmatpush1.bf16.msra.mxu0 %v356
    %509 = vmatprep.subr.bf16.mxu0 %v361
    %510 = vmatpush1.bf16.msra.mxu0 %v360
    %511 = vmatprep.subr.bf16.mxu0 %v365
    %512 = vmatpush1.bf16.msra.mxu0 %v364
    %513 = vmatprep.subr.bf16.mxu0 %v369
    %514 = vmatpush1.bf16.msra.mxu0 %v368
    %515 = vmatprep.subr.bf16.mxu0 %v373
    %516 = vmatpush1.bf16.msra.mxu0 %v372
    %517 = vmatprep.subr.bf16.mxu0 %v377
    %518 = vmatpush1.bf16.msra.mxu0 %v376
    %519 = vmatprep.subr.bf16.mxu0 %v381
    %520 = vmatpush1.bf16.msra.mxu0 %v380
    %521 = vmatprep.mubr.bf16.mxu0 %v123
    %522 = vmatmul.mubr.bf16.gmra.mrb[0].mxu0 %v122
    %v523 = vpop.f32.mrb[0].mxu0
    %v524 = vadd.f32 %v107, %v523
    %v525 = vpop.f32.mrb[0].mxu0
    %v526 = vadd.f32 %v111, %v525
    %v527 = vpop.f32.mrb[0].mxu0
    %v528 = vadd.f32 %v107, %v527
    %v529 = vpop.f32.mrb[0].mxu0
    %v530 = vadd.f32 %v111, %v529
    %531 = vdwg.mxu0
    %vm532 = vcmp.gt.f32.partialorder %v481, 0.0
    %vm533 = vcmp.gt.f32.partialorder %v483, 0.0
    %vm534 = vcmp.gt.f32.partialorder %v524, 0.0
    %vm535 = vcmp.gt.f32.partialorder %v526, 0.0
    %vm536 = vcmp.gt.f32.partialorder %v485, 0.0
    %vm537 = vcmp.gt.f32.partialorder %v487, 0.0
    %vm538 = vcmp.gt.f32.partialorder %v528, 0.0
    %vm539 = vcmp.gt.f32.partialorder %v530, 0.0
    %v540 = vmul.f32 %v481, 0.2
    %v541 = vmul.f32 %v483, 0.2
    %v542 = vmul.f32 %v524, 0.2
    %v543 = vmul.f32 %v526, 0.2
    %v544 = vmul.f32 %v485, 0.2
    %v545 = vmul.f32 %v487, 0.2
    %v546 = vmul.f32 %v528, 0.2
    %v547 = vmul.f32 %v530, 0.2
    %v548 = vsel %vm532, %v481, %v540
    %v549 = vsel %vm533, %v483, %v541
    %v550 = vsel %vm534, %v524, %v542
    %v551 = vsel %vm535, %v526, %v543
    %v552 = vsel %vm536, %v485, %v544
    %v553 = vsel %vm537, %v487, %v545
    %v554 = vsel %vm538, %v528, %v546
    %v555 = vsel %vm539, %v530, %v547
    %v556 = vpack.c.bf16 %v552, %v548
    %v557 = vpack.c.bf16 %v553, %v549
    %v558 = vpack.c.bf16 %v554, %v550
    %v559 = vpack.c.bf16 %v555, %v551
    %v560 = vld [vmem:[%s3] sm:$0xff]
    %v561 = vld [vmem:[%s3 + $0x8] sm:$0xff]
    %v562 = vld [vmem:[%s3 + $0x10] sm:$0xff]
    %v563 = vld [vmem:[%s3 + $0x18] sm:$0xff]
    %v564 = vld [vmem:[%s3 + $0x20] sm:$0xff]
    %v565 = vld [vmem:[%s3 + $0x28] sm:$0xff]
    %v566 = vld [vmem:[%s3 + $0x30] sm:$0xff]
    %v567 = vld [vmem:[%s3 + $0x38] sm:$0xff]
    %v568 = vld [vmem:[%s3 + $0x40] sm:$0xff]
    %v569 = vld [vmem:[%s3 + $0x48] sm:$0xff]
    %v570 = vld [vmem:[%s3 + $0x50] sm:$0xff]
    %v571 = vld [vmem:[%s3 + $0x58] sm:$0xff]
    %v572 = vld [vmem:[%s3 + $0x60] sm:$0xff]
    %v573 = vld [vmem:[%s3 + $0x68] sm:$0xff]
    %v574 = vld [vmem:[%s3 + $0x70] sm:$0xff]
    %v575 = vld [vmem:[%s3 + $0x78] sm:$0xff]
    %v576 = vld [vmem:[%s3 + $0x80] sm:$0xff]
    %v577 = vld [vmem:[%s3 + $0x88] sm:$0xff]
    %v578 = vld [vmem:[%s3 + $0x90] sm:$0xff]
    %v579 = vld [vmem:[%s3 + $0x98] sm:$0xff]
    %v580 = vld [vmem:[%s3 + $0xa0] sm:$0xff]
    %v581 = vld [vmem:[%s3 + $0xa8] sm:$0xff]
    %v582 = vld [vmem:[%s3 + $0xb0] sm:$0xff]
    %v583 = vld [vmem:[%s3 + $0xb8] sm:$0xff]
    %v584 = vld [vmem:[%s3 + $0xc0] sm:$0xff]
    %v585 = vld [vmem:[%s3 + $0xc8] sm:$0xff]
    %v586 = vld [vmem:[%s3 + $0xd0] sm:$0xff]
    %v587 = vld [vmem:[%s3 + $0xd8] sm:$0xff]
    %v588 = vld [vmem:[%s3 + $0xe0] sm:$0xff]
    %v589 = vld [vmem:[%s3 + $0xe8] sm:$0xff]
    %v590 = vld [vmem:[%s3 + $0xf0] sm:$0xff]
    %v591 = vld [vmem:[%s3 + $0xf8] sm:$0xff]
    %v592 = vld [vmem:[%s3 + $0x100] sm:$0xff]
    %v593 = vld [vmem:[%s3 + $0x108] sm:$0xff]
    %v594 = vld [vmem:[%s3 + $0x110] sm:$0xff]
    %v595 = vld [vmem:[%s3 + $0x118] sm:$0xff]
    %v596 = vld [vmem:[%s3 + $0x120] sm:$0xff]
    %v597 = vld [vmem:[%s3 + $0x128] sm:$0xff]
    %v598 = vld [vmem:[%s3 + $0x130] sm:$0xff]
    %v599 = vld [vmem:[%s3 + $0x138] sm:$0xff]
    %v600 = vld [vmem:[%s3 + $0x140] sm:$0xff]
    %v601 = vld [vmem:[%s3 + $0x148] sm:$0xff]
    %v602 = vld [vmem:[%s3 + $0x150] sm:$0xff]
    %v603 = vld [vmem:[%s3 + $0x158] sm:$0xff]
    %v604 = vld [vmem:[%s3 + $0x160] sm:$0xff]
    %v605 = vld [vmem:[%s3 + $0x168] sm:$0xff]
    %v606 = vld [vmem:[%s3 + $0x170] sm:$0xff]
    %v607 = vld [vmem:[%s3 + $0x178] sm:$0xff]
    %v608 = vld [vmem:[%s3 + $0x180] sm:$0xff]
    %v609 = vld [vmem:[%s3 + $0x188] sm:$0xff]
    %v610 = vld [vmem:[%s3 + $0x190] sm:$0xff]
    %v611 = vld [vmem:[%s3 + $0x198] sm:$0xff]
    %v612 = vld [vmem:[%s3 + $0x1a0] sm:$0xff]
    %v613 = vld [vmem:[%s3 + $0x1a8] sm:$0xff]
    %v614 = vld [vmem:[%s3 + $0x1b0] sm:$0xff]
    %v615 = vld [vmem:[%s3 + $0x1b8] sm:$0xff]
    %v616 = vld [vmem:[%s3 + $0x1c0] sm:$0xff]
    %v617 = vld [vmem:[%s3 + $0x1c8] sm:$0xff]
    %v618 = vld [vmem:[%s3 + $0x1d0] sm:$0xff]
    %v619 = vld [vmem:[%s3 + $0x1d8] sm:$0xff]
    %v620 = vld [vmem:[%s3 + $0x1e0] sm:$0xff]
    %v621 = vld [vmem:[%s3 + $0x1e8] sm:$0xff]
    %v622 = vld [vmem:[%s3 + $0x1f0] sm:$0xff]
    %v623 = vld [vmem:[%s3 + $0x1f8] sm:$0xff]
    %v624 = vld [vmem:[%s3 + $0x200] sm:$0xff]
    %v625 = vld [vmem:[%s3 + $0x208] sm:$0xff]
    %v626 = vld [vmem:[%s3 + $0x210] sm:$0xff]
    %v627 = vld [vmem:[%s3 + $0x218] sm:$0xff]
    %v628 = vld [vmem:[%s3 + $0x220] sm:$0xff]
    %v629 = vld [vmem:[%s3 + $0x228] sm:$0xff]
    %v630 = vld [vmem:[%s3 + $0x230] sm:$0xff]
    %v631 = vld [vmem:[%s3 + $0x238] sm:$0xff]
    %v632 = vld [vmem:[%s3 + $0x240] sm:$0xff]
    %v633 = vld [vmem:[%s3 + $0x248] sm:$0xff]
    %v634 = vld [vmem:[%s3 + $0x250] sm:$0xff]
    %v635 = vld [vmem:[%s3 + $0x258] sm:$0xff]
    %v636 = vld [vmem:[%s3 + $0x260] sm:$0xff]
    %v637 = vld [vmem:[%s3 + $0x268] sm:$0xff]
    %v638 = vld [vmem:[%s3 + $0x270] sm:$0xff]
    %v639 = vld [vmem:[%s3 + $0x278] sm:$0xff]
    %v640 = vld [vmem:[%s3 + $0x280] sm:$0xff]
    %v641 = vld [vmem:[%s3 + $0x288] sm:$0xff]
    %v642 = vld [vmem:[%s3 + $0x290] sm:$0xff]
    %v643 = vld [vmem:[%s3 + $0x298] sm:$0xff]
    %v644 = vld [vmem:[%s3 + $0x2a0] sm:$0xff]
    %v645 = vld [vmem:[%s3 + $0x2a8] sm:$0xff]
    %v646 = vld [vmem:[%s3 + $0x2b0] sm:$0xff]
    %v647 = vld [vmem:[%s3 + $0x2b8] sm:$0xff]
    %v648 = vld [vmem:[%s3 + $0x2c0] sm:$0xff]
    %v649 = vld [vmem:[%s3 + $0x2c8] sm:$0xff]
    %v650 = vld [vmem:[%s3 + $0x2d0] sm:$0xff]
    %v651 = vld [vmem:[%s3 + $0x2d8] sm:$0xff]
    %v652 = vld [vmem:[%s3 + $0x2e0] sm:$0xff]
    %v653 = vld [vmem:[%s3 + $0x2e8] sm:$0xff]
    %v654 = vld [vmem:[%s3 + $0x2f0] sm:$0xff]
    %v655 = vld [vmem:[%s3 + $0x2f8] sm:$0xff]
    %v656 = vld [vmem:[%s3 + $0x300] sm:$0xff]
    %v657 = vld [vmem:[%s3 + $0x308] sm:$0xff]
    %v658 = vld [vmem:[%s3 + $0x310] sm:$0xff]
    %v659 = vld [vmem:[%s3 + $0x318] sm:$0xff]
    %v660 = vld [vmem:[%s3 + $0x320] sm:$0xff]
    %v661 = vld [vmem:[%s3 + $0x328] sm:$0xff]
    %v662 = vld [vmem:[%s3 + $0x330] sm:$0xff]
    %v663 = vld [vmem:[%s3 + $0x338] sm:$0xff]
    %v664 = vld [vmem:[%s3 + $0x340] sm:$0xff]
    %v665 = vld [vmem:[%s3 + $0x348] sm:$0xff]
    %v666 = vld [vmem:[%s3 + $0x350] sm:$0xff]
    %v667 = vld [vmem:[%s3 + $0x358] sm:$0xff]
    %v668 = vld [vmem:[%s3 + $0x360] sm:$0xff]
    %v669 = vld [vmem:[%s3 + $0x368] sm:$0xff]
    %v670 = vld [vmem:[%s3 + $0x370] sm:$0xff]
    %v671 = vld [vmem:[%s3 + $0x378] sm:$0xff]
    %v672 = vld [vmem:[%s3 + $0x380] sm:$0xff]
    %v673 = vld [vmem:[%s3 + $0x388] sm:$0xff]
    %v674 = vld [vmem:[%s3 + $0x390] sm:$0xff]
    %v675 = vld [vmem:[%s3 + $0x398] sm:$0xff]
    %v676 = vld [vmem:[%s3 + $0x3a0] sm:$0xff]
    %v677 = vld [vmem:[%s3 + $0x3a8] sm:$0xff]
    %v678 = vld [vmem:[%s3 + $0x3b0] sm:$0xff]
    %v679 = vld [vmem:[%s3 + $0x3b8] sm:$0xff]
    %v680 = vld [vmem:[%s3 + $0x3c0] sm:$0xff]
    %v681 = vld [vmem:[%s3 + $0x3c8] sm:$0xff]
    %v682 = vld [vmem:[%s3 + $0x3d0] sm:$0xff]
    %v683 = vld [vmem:[%s3 + $0x3d8] sm:$0xff]
    %v684 = vld [vmem:[%s3 + $0x3e0] sm:$0xff]
    %v685 = vld [vmem:[%s3 + $0x3e8] sm:$0xff]
    %v686 = vld [vmem:[%s3 + $0x3f0] sm:$0xff]
    %v687 = vld [vmem:[%s3 + $0x3f8] sm:$0xff]
    %v688 = vld [vmem:[%s4] sm:$0xf]
    %v690 = vlaneseq
    %v691 = vshrl.u32 %v690, 7
    %v692 = vsub.s32 0, %v691
    %v693 = vrot.slane %v688, %v692
    %v694 = vlaneseq
    %v695 = vshrl.u32 %v694, 7
    %v696 = vsub.s32 1, %v695
    %v697 = vrot.slane %v688, %v696
    %v698 = vlaneseq
    %v699 = vshrl.u32 %v698, 7
    %v700 = vsub.s32 2, %v699
    %v701 = vrot.slane %v688, %v700
    %v702 = vlaneseq
    %v703 = vshrl.u32 %v702, 7
    %v704 = vsub.s32 3, %v703
    %v705 = vrot.slane %v688, %v704
    %v838 = vunpack.c.l.b16 %v560
    %v839 = vunpack.c.h.b16 %v560
    %v840 = vunpack.c.l.b16 %v561
    %v841 = vunpack.c.h.b16 %v561
    %v842 = vunpack.c.l.b16 %v562
    %v843 = vunpack.c.h.b16 %v562
    %v844 = vunpack.c.l.b16 %v563
    %v845 = vunpack.c.h.b16 %v563
    %v846 = vunpack.c.l.b16 %v564
    %v847 = vunpack.c.h.b16 %v564
    %v848 = vunpack.c.l.b16 %v565
    %v849 = vunpack.c.h.b16 %v565
    %v850 = vunpack.c.l.b16 %v566
    %v851 = vunpack.c.h.b16 %v566
    %v852 = vunpack.c.l.b16 %v567
    %v853 = vunpack.c.h.b16 %v567
    %v854 = vunpack.c.l.b16 %v568
    %v855 = vunpack.c.h.b16 %v568
    %v856 = vunpack.c.l.b16 %v569
    %v857 = vunpack.c.h.b16 %v569
    %v858 = vunpack.c.l.b16 %v570
    %v859 = vunpack.c.h.b16 %v570
    %v860 = vunpack.c.l.b16 %v571
    %v861 = vunpack.c.h.b16 %v571
    %v862 = vunpack.c.l.b16 %v572
    %v863 = vunpack.c.h.b16 %v572
    %v864 = vunpack.c.l.b16 %v573
    %v865 = vunpack.c.h.b16 %v573
    %v866 = vunpack.c.l.b16 %v574
    %v867 = vunpack.c.h.b16 %v574
    %v868 = vunpack.c.l.b16 %v575
    %v869 = vunpack.c.h.b16 %v575
    %v870 = vunpack.c.l.b16 %v576
    %v871 = vunpack.c.h.b16 %v576
    %v872 = vunpack.c.l.b16 %v577
    %v873 = vunpack.c.h.b16 %v577
    %v874 = vunpack.c.l.b16 %v578
    %v875 = vunpack.c.h.b16 %v578
    %v876 = vunpack.c.l.b16 %v579
    %v877 = vunpack.c.h.b16 %v579
    %v878 = vunpack.c.l.b16 %v580
    %v879 = vunpack.c.h.b16 %v580
    %v880 = vunpack.c.l.b16 %v581
    %v881 = vunpack.c.h.b16 %v581
    %v882 = vunpack.c.l.b16 %v582
    %v883 = vunpack.c.h.b16 %v582
    %v884 = vunpack.c.l.b16 %v583
    %v885 = vunpack.c.h.b16 %v583
    %v886 = vunpack.c.l.b16 %v584
    %v887 = vunpack.c.h.b16 %v584
    %v888 = vunpack.c.l.b16 %v585
    %v889 = vunpack.c.h.b16 %v585
    %v890 = vunpack.c.l.b16 %v586
    %v891 = vunpack.c.h.b16 %v586
    %v892 = vunpack.c.l.b16 %v587
    %v893 = vunpack.c.h.b16 %v587
    %v894 = vunpack.c.l.b16 %v588
    %v895 = vunpack.c.h.b16 %v588
    %v896 = vunpack.c.l.b16 %v589
    %v897 = vunpack.c.h.b16 %v589
    %v898 = vunpack.c.l.b16 %v590
    %v899 = vunpack.c.h.b16 %v590
    %v900 = vunpack.c.l.b16 %v591
    %v901 = vunpack.c.h.b16 %v591
    %v902 = vunpack.c.l.b16 %v592
    %v903 = vunpack.c.h.b16 %v592
    %v904 = vunpack.c.l.b16 %v593
    %v905 = vunpack.c.h.b16 %v593
    %v906 = vunpack.c.l.b16 %v594
    %v907 = vunpack.c.h.b16 %v594
    %v908 = vunpack.c.l.b16 %v595
    %v909 = vunpack.c.h.b16 %v595
    %v910 = vunpack.c.l.b16 %v596
    %v911 = vunpack.c.h.b16 %v596
    %v912 = vunpack.c.l.b16 %v597
    %v913 = vunpack.c.h.b16 %v597
    %v914 = vunpack.c.l.b16 %v598
    %v915 = vunpack.c.h.b16 %v598
    %v916 = vunpack.c.l.b16 %v599
    %v917 = vunpack.c.h.b16 %v599
    %v918 = vunpack.c.l.b16 %v600
    %v919 = vunpack.c.h.b16 %v600
    %v920 = vunpack.c.l.b16 %v601
    %v921 = vunpack.c.h.b16 %v601
    %v922 = vunpack.c.l.b16 %v602
    %v923 = vunpack.c.h.b16 %v602
    %v924 = vunpack.c.l.b16 %v603
    %v925 = vunpack.c.h.b16 %v603
    %v926 = vunpack.c.l.b16 %v604
    %v927 = vunpack.c.h.b16 %v604
    %v928 = vunpack.c.l.b16 %v605
    %v929 = vunpack.c.h.b16 %v605
    %v930 = vunpack.c.l.b16 %v606
    %v931 = vunpack.c.h.b16 %v606
    %v932 = vunpack.c.l.b16 %v607
    %v933 = vunpack.c.h.b16 %v607
    %v934 = vunpack.c.l.b16 %v608
    %v935 = vunpack.c.h.b16 %v608
    %v936 = vunpack.c.l.b16 %v609
    %v937 = vunpack.c.h.b16 %v609
    %v938 = vunpack.c.l.b16 %v610
    %v939 = vunpack.c.h.b16 %v610
    %v940 = vunpack.c.l.b16 %v611
    %v941 = vunpack.c.h.b16 %v611
    %v942 = vunpack.c.l.b16 %v612
    %v943 = vunpack.c.h.b16 %v612
    %v944 = vunpack.c.l.b16 %v613
    %v945 = vunpack.c.h.b16 %v613
    %v946 = vunpack.c.l.b16 %v614
    %v947 = vunpack.c.h.b16 %v614
    %v948 = vunpack.c.l.b16 %v615
    %v949 = vunpack.c.h.b16 %v615
    %v950 = vunpack.c.l.b16 %v616
    %v951 = vunpack.c.h.b16 %v616
    %v952 = vunpack.c.l.b16 %v617
    %v953 = vunpack.c.h.b16 %v617
    %v954 = vunpack.c.l.b16 %v618
    %v955 = vunpack.c.h.b16 %v618
    %v956 = vunpack.c.l.b16 %v619
    %v957 = vunpack.c.h.b16 %v619
    %v958 = vunpack.c.l.b16 %v620
    %v959 = vunpack.c.h.b16 %v620
    %v960 = vunpack.c.l.b16 %v621
    %v961 = vunpack.c.h.b16 %v621
    %v962 = vunpack.c.l.b16 %v622
    %v963 = vunpack.c.h.b16 %v622
    %v964 = vunpack.c.l.b16 %v623
    %v965 = vunpack.c.h.b16 %v623
    %v966 = vunpack.c.l.b16 %v624
    %v967 = vunpack.c.h.b16 %v624
    %v968 = vunpack.c.l.b16 %v625
    %v969 = vunpack.c.h.b16 %v625
    %v970 = vunpack.c.l.b16 %v626
    %v971 = vunpack.c.h.b16 %v626
    %v972 = vunpack.c.l.b16 %v627
    %v973 = vunpack.c.h.b16 %v627
    %v974 = vunpack.c.l.b16 %v628
    %v975 = vunpack.c.h.b16 %v628
    %v976 = vunpack.c.l.b16 %v629
    %v977 = vunpack.c.h.b16 %v629
    %v978 = vunpack.c.l.b16 %v630
    %v979 = vunpack.c.h.b16 %v630
    %v980 = vunpack.c.l.b16 %v631
    %v981 = vunpack.c.h.b16 %v631
    %v982 = vunpack.c.l.b16 %v632
    %v983 = vunpack.c.h.b16 %v632
    %v984 = vunpack.c.l.b16 %v633
    %v985 = vunpack.c.h.b16 %v633
    %v986 = vunpack.c.l.b16 %v634
    %v987 = vunpack.c.h.b16 %v634
    %v988 = vunpack.c.l.b16 %v635
    %v989 = vunpack.c.h.b16 %v635
    %v990 = vunpack.c.l.b16 %v636
    %v991 = vunpack.c.h.b16 %v636
    %v992 = vunpack.c.l.b16 %v637
    %v993 = vunpack.c.h.b16 %v637
    %v994 = vunpack.c.l.b16 %v638
    %v995 = vunpack.c.h.b16 %v638
    %v996 = vunpack.c.l.b16 %v639
    %v997 = vunpack.c.h.b16 %v639
    %v998 = vunpack.c.l.b16 %v640
    %v999 = vunpack.c.h.b16 %v640
    %v1000 = vunpack.c.l.b16 %v641
    %v1001 = vunpack.c.h.b16 %v641
    %v1002 = vunpack.c.l.b16 %v642
    %v1003 = vunpack.c.h.b16 %v642
    %v1004 = vunpack.c.l.b16 %v643
    %v1005 = vunpack.c.h.b16 %v643
    %v1006 = vunpack.c.l.b16 %v644
    %v1007 = vunpack.c.h.b16 %v644
    %v1008 = vunpack.c.l.b16 %v645
    %v1009 = vunpack.c.h.b16 %v645
    %v1010 = vunpack.c.l.b16 %v646
    %v1011 = vunpack.c.h.b16 %v646
    %v1012 = vunpack.c.l.b16 %v647
    %v1013 = vunpack.c.h.b16 %v647
    %v1014 = vunpack.c.l.b16 %v648
    %v1015 = vunpack.c.h.b16 %v648
    %v1016 = vunpack.c.l.b16 %v649
    %v1017 = vunpack.c.h.b16 %v649
    %v1018 = vunpack.c.l.b16 %v650
    %v1019 = vunpack.c.h.b16 %v650
    %v1020 = vunpack.c.l.b16 %v651
    %v1021 = vunpack.c.h.b16 %v651
    %v1022 = vunpack.c.l.b16 %v652
    %v1023 = vunpack.c.h.b16 %v652
    %v1024 = vunpack.c.l.b16 %v653
    %v1025 = vunpack.c.h.b16 %v653
    %v1026 = vunpack.c.l.b16 %v654
    %v1027 = vunpack.c.h.b16 %v654
    %v1028 = vunpack.c.l.b16 %v655
    %v1029 = vunpack.c.h.b16 %v655
    %v1030 = vunpack.c.l.b16 %v656
    %v1031 = vunpack.c.h.b16 %v656
    %v1032 = vunpack.c.l.b16 %v657
    %v1033 = vunpack.c.h.b16 %v657
    %v1034 = vunpack.c.l.b16 %v658
    %v1035 = vunpack.c.h.b16 %v658
    %v1036 = vunpack.c.l.b16 %v659
    %v1037 = vunpack.c.h.b16 %v659
    %v1038 = vunpack.c.l.b16 %v660
    %v1039 = vunpack.c.h.b16 %v660
    %v1040 = vunpack.c.l.b16 %v661
    %v1041 = vunpack.c.h.b16 %v661
    %v1042 = vunpack.c.l.b16 %v662
    %v1043 = vunpack.c.h.b16 %v662
    %v1044 = vunpack.c.l.b16 %v663
    %v1045 = vunpack.c.h.b16 %v663
    %v1046 = vunpack.c.l.b16 %v664
    %v1047 = vunpack.c.h.b16 %v664
    %v1048 = vunpack.c.l.b16 %v665
    %v1049 = vunpack.c.h.b16 %v665
    %v1050 = vunpack.c.l.b16 %v666
    %v1051 = vunpack.c.h.b16 %v666
    %v1052 = vunpack.c.l.b16 %v667
    %v1053 = vunpack.c.h.b16 %v667
    %v1054 = vunpack.c.l.b16 %v668
    %v1055 = vunpack.c.h.b16 %v668
    %v1056 = vunpack.c.l.b16 %v669
    %v1057 = vunpack.c.h.b16 %v669
    %v1058 = vunpack.c.l.b16 %v670
    %v1059 = vunpack.c.h.b16 %v670
    %v1060 = vunpack.c.l.b16 %v671
    %v1061 = vunpack.c.h.b16 %v671
    %v1062 = vunpack.c.l.b16 %v672
    %v1063 = vunpack.c.h.b16 %v672
    %v1064 = vunpack.c.l.b16 %v673
    %v1065 = vunpack.c.h.b16 %v673
    %v1066 = vunpack.c.l.b16 %v674
    %v1067 = vunpack.c.h.b16 %v674
    %v1068 = vunpack.c.l.b16 %v675
    %v1069 = vunpack.c.h.b16 %v675
    %v1070 = vunpack.c.l.b16 %v676
    %v1071 = vunpack.c.h.b16 %v676
    %v1072 = vunpack.c.l.b16 %v677
    %v1073 = vunpack.c.h.b16 %v677
    %v1074 = vunpack.c.l.b16 %v678
    %v1075 = vunpack.c.h.b16 %v678
    %v1076 = vunpack.c.l.b16 %v679
    %v1077 = vunpack.c.h.b16 %v679
    %v1078 = vunpack.c.l.b16 %v680
    %v1079 = vunpack.c.h.b16 %v680
    %v1080 = vunpack.c.l.b16 %v681
    %v1081 = vunpack.c.h.b16 %v681
    %v1082 = vunpack.c.l.b16 %v682
    %v1083 = vunpack.c.h.b16 %v682
    %v1084 = vunpack.c.l.b16 %v683
    %v1085 = vunpack.c.h.b16 %v683
    %v1086 = vunpack.c.l.b16 %v684
    %v1087 = vunpack.c.h.b16 %v684
    %v1088 = vunpack.c.l.b16 %v685
    %v1089 = vunpack.c.h.b16 %v685
    %v1090 = vunpack.c.l.b16 %v686
    %v1091 = vunpack.c.h.b16 %v686
    %v1092 = vunpack.c.l.b16 %v687
    %v1093 = vunpack.c.h.b16 %v687
    %v1094 = vpack.c.b16 %v842, %v838
    %v1095 = vpack.c.b16 %v843, %v839
    %v1096 = vpack.c.b16 %v844, %v840
    %v1097 = vpack.c.b16 %v845, %v841
    %v1098 = vpack.c.b16 %v850, %v846
    %v1099 = vpack.c.b16 %v851, %v847
    %v1100 = vpack.c.b16 %v852, %v848
    %v1101 = vpack.c.b16 %v853, %v849
    %v1102 = vpack.c.b16 %v858, %v854
    %v1103 = vpack.c.b16 %v859, %v855
    %v1104 = vpack.c.b16 %v860, %v856
    %v1105 = vpack.c.b16 %v861, %v857
    %v1106 = vpack.c.b16 %v866, %v862
    %v1107 = vpack.c.b16 %v867, %v863
    %v1108 = vpack.c.b16 %v868, %v864
    %v1109 = vpack.c.b16 %v869, %v865
    %v1110 = vpack.c.b16 %v874, %v870
    %v1111 = vpack.c.b16 %v875, %v871
    %v1112 = vpack.c.b16 %v876, %v872
    %v1113 = vpack.c.b16 %v877, %v873
    %v1114 = vpack.c.b16 %v882, %v878
    %v1115 = vpack.c.b16 %v883, %v879
    %v1116 = vpack.c.b16 %v884, %v880
    %v1117 = vpack.c.b16 %v885, %v881
    %v1118 = vpack.c.b16 %v890, %v886
    %v1119 = vpack.c.b16 %v891, %v887
    %v1120 = vpack.c.b16 %v892, %v888
    %v1121 = vpack.c.b16 %v893, %v889
    %v1122 = vpack.c.b16 %v898, %v894
    %v1123 = vpack.c.b16 %v899, %v895
    %v1124 = vpack.c.b16 %v900, %v896
    %v1125 = vpack.c.b16 %v901, %v897
    %v1126 = vpack.c.b16 %v906, %v902
    %v1127 = vpack.c.b16 %v907, %v903
    %v1128 = vpack.c.b16 %v908, %v904
    %v1129 = vpack.c.b16 %v909, %v905
    %v1130 = vpack.c.b16 %v914, %v910
    %v1131 = vpack.c.b16 %v915, %v911
    %v1132 = vpack.c.b16 %v916, %v912
    %v1133 = vpack.c.b16 %v917, %v913
    %v1134 = vpack.c.b16 %v922, %v918
    %v1135 = vpack.c.b16 %v923, %v919
    %v1136 = vpack.c.b16 %v924, %v920
    %v1137 = vpack.c.b16 %v925, %v921
    %v1138 = vpack.c.b16 %v930, %v926
    %v1139 = vpack.c.b16 %v931, %v927
    %v1140 = vpack.c.b16 %v932, %v928
    %v1141 = vpack.c.b16 %v933, %v929
    %v1142 = vpack.c.b16 %v938, %v934
    %v1143 = vpack.c.b16 %v939, %v935
    %v1144 = vpack.c.b16 %v940, %v936
    %v1145 = vpack.c.b16 %v941, %v937
    %v1146 = vpack.c.b16 %v946, %v942
    %v1147 = vpack.c.b16 %v947, %v943
    %v1148 = vpack.c.b16 %v948, %v944
    %v1149 = vpack.c.b16 %v949, %v945
    %v1150 = vpack.c.b16 %v954, %v950
    %v1151 = vpack.c.b16 %v955, %v951
    %v1152 = vpack.c.b16 %v956, %v952
    %v1153 = vpack.c.b16 %v957, %v953
    %v1154 = vpack.c.b16 %v962, %v958
    %v1155 = vpack.c.b16 %v963, %v959
    %v1156 = vpack.c.b16 %v964, %v960
    %v1157 = vpack.c.b16 %v965, %v961
    %v1158 = vpack.c.b16 %v970, %v966
    %v1159 = vpack.c.b16 %v971, %v967
    %v1160 = vpack.c.b16 %v972, %v968
    %v1161 = vpack.c.b16 %v973, %v969
    %v1162 = vpack.c.b16 %v978, %v974
    %v1163 = vpack.c.b16 %v979, %v975
    %v1164 = vpack.c.b16 %v980, %v976
    %v1165 = vpack.c.b16 %v981, %v977
    %v1166 = vpack.c.b16 %v986, %v982
    %v1167 = vpack.c.b16 %v987, %v983
    %v1168 = vpack.c.b16 %v988, %v984
    %v1169 = vpack.c.b16 %v989, %v985
    %v1170 = vpack.c.b16 %v994, %v990
    %v1171 = vpack.c.b16 %v995, %v991
    %v1172 = vpack.c.b16 %v996, %v992
    %v1173 = vpack.c.b16 %v997, %v993
    %v1174 = vpack.c.b16 %v1002, %v998
    %v1175 = vpack.c.b16 %v1003, %v999
    %v1176 = vpack.c.b16 %v1004, %v1000
    %v1177 = vpack.c.b16 %v1005, %v1001
    %v1178 = vpack.c.b16 %v1010, %v1006
    %v1179 = vpack.c.b16 %v1011, %v1007
    %v1180 = vpack.c.b16 %v1012, %v1008
    %v1181 = vpack.c.b16 %v1013, %v1009
    %v1182 = vpack.c.b16 %v1018, %v1014
    %v1183 = vpack.c.b16 %v1019, %v1015
    %v1184 = vpack.c.b16 %v1020, %v1016
    %v1185 = vpack.c.b16 %v1021, %v1017
    %v1186 = vpack.c.b16 %v1026, %v1022
    %v1187 = vpack.c.b16 %v1027, %v1023
    %v1188 = vpack.c.b16 %v1028, %v1024
    %v1189 = vpack.c.b16 %v1029, %v1025
    %v1190 = vpack.c.b16 %v1034, %v1030
    %v1191 = vpack.c.b16 %v1035, %v1031
    %v1192 = vpack.c.b16 %v1036, %v1032
    %v1193 = vpack.c.b16 %v1037, %v1033
    %v1194 = vpack.c.b16 %v1042, %v1038
    %v1195 = vpack.c.b16 %v1043, %v1039
    %v1196 = vpack.c.b16 %v1044, %v1040
    %v1197 = vpack.c.b16 %v1045, %v1041
    %v1198 = vpack.c.b16 %v1050, %v1046
    %v1199 = vpack.c.b16 %v1051, %v1047
    %v1200 = vpack.c.b16 %v1052, %v1048
    %v1201 = vpack.c.b16 %v1053, %v1049
    %v1202 = vpack.c.b16 %v1058, %v1054
    %v1203 = vpack.c.b16 %v1059, %v1055
    %v1204 = vpack.c.b16 %v1060, %v1056
    %v1205 = vpack.c.b16 %v1061, %v1057
    %v1206 = vpack.c.b16 %v1066, %v1062
    %v1207 = vpack.c.b16 %v1067, %v1063
    %v1208 = vpack.c.b16 %v1068, %v1064
    %v1209 = vpack.c.b16 %v1069, %v1065
    %v1210 = vpack.c.b16 %v1074, %v1070
    %v1211 = vpack.c.b16 %v1075, %v1071
    %v1212 = vpack.c.b16 %v1076, %v1072
    %v1213 = vpack.c.b16 %v1077, %v1073
    %v1214 = vpack.c.b16 %v1082, %v1078
    %v1215 = vpack.c.b16 %v1083, %v1079
    %v1216 = vpack.c.b16 %v1084, %v1080
    %v1217 = vpack.c.b16 %v1085, %v1081
    %v1218 = vpack.c.b16 %v1090, %v1086
    %v1219 = vpack.c.b16 %v1091, %v1087
    %v1220 = vpack.c.b16 %v1092, %v1088
    %v1221 = vpack.c.b16 %v1093, %v1089
    %1350 = vmatprep.subr.bf16.mxu0 %v1095
    %1351 = vmatpush1.bf16.msra.mxu0 %v1094
    %1352 = vmatprep.subr.bf16.mxu0 %v1099
    %1353 = vmatpush1.bf16.msra.mxu0 %v1098
    %1354 = vmatprep.subr.bf16.mxu0 %v1103
    %1355 = vmatpush1.bf16.msra.mxu0 %v1102
    %1356 = vmatprep.subr.bf16.mxu0 %v1107
    %1357 = vmatpush1.bf16.msra.mxu0 %v1106
    %1358 = vmatprep.subr.bf16.mxu0 %v1111
    %1359 = vmatpush1.bf16.msra.mxu0 %v1110
    %1360 = vmatprep.subr.bf16.mxu0 %v1115
    %1361 = vmatpush1.bf16.msra.mxu0 %v1114
    %1362 = vmatprep.subr.bf16.mxu0 %v1119
    %1363 = vmatpush1.bf16.msra.mxu0 %v1118
    %1364 = vmatprep.subr.bf16.mxu0 %v1123
    %1365 = vmatpush1.bf16.msra.mxu0 %v1122
    %1366 = vmatprep.subr.bf16.mxu0 %v1127
    %1367 = vmatpush1.bf16.msra.mxu0 %v1126
    %1368 = vmatprep.subr.bf16.mxu0 %v1131
    %1369 = vmatpush1.bf16.msra.mxu0 %v1130
    %1370 = vmatprep.subr.bf16.mxu0 %v1135
    %1371 = vmatpush1.bf16.msra.mxu0 %v1134
    %1372 = vmatprep.subr.bf16.mxu0 %v1139
    %1373 = vmatpush1.bf16.msra.mxu0 %v1138
    %1374 = vmatprep.subr.bf16.mxu0 %v1143
    %1375 = vmatpush1.bf16.msra.mxu0 %v1142
    %1376 = vmatprep.subr.bf16.mxu0 %v1147
    %1377 = vmatpush1.bf16.msra.mxu0 %v1146
    %1378 = vmatprep.subr.bf16.mxu0 %v1151
    %1379 = vmatpush1.bf16.msra.mxu0 %v1150
    %1380 = vmatprep.subr.bf16.mxu0 %v1155
    %1381 = vmatpush1.bf16.msra.mxu0 %v1154
    %1382 = vmatprep.mubr.bf16.mxu0 %v557
    %1383 = vmatmul.mubr.bf16.gmra.mrb[0].mxu0 %v556
    %v1384 = vpop.f32.mrb[0].mxu0
    %v1385 = vadd.f32 %v693, %v1384
    %v1386 = vpop.f32.mrb[0].mxu0
    %v1387 = vadd.f32 %v697, %v1386
    %v1388 = vpop.f32.mrb[0].mxu0
    %v1389 = vadd.f32 %v693, %v1388
    %v1390 = vpop.f32.mrb[0].mxu0
    %v1391 = vadd.f32 %v697, %v1390
    %1392 = vdwg.mxu0
    %1393 = vmatprep.subr.bf16.mxu0 %v1159
    %1394 = vmatpush1.bf16.msra.mxu0 %v1158
    %1395 = vmatprep.subr.bf16.mxu0 %v1163
    %1396 = vmatpush1.bf16.msra.mxu0 %v1162
    %1397 = vmatprep.subr.bf16.mxu0 %v1167
    %1398 = vmatpush1.bf16.msra.mxu0 %v1166
    %1399 = vmatprep.subr.bf16.mxu0 %v1171
    %1400 = vmatpush1.bf16.msra.mxu0 %v1170
    %1401 = vmatprep.subr.bf16.mxu0 %v1175
    %1402 = vmatpush1.bf16.msra.mxu0 %v1174
    %1403 = vmatprep.subr.bf16.mxu0 %v1179
    %1404 = vmatpush1.bf16.msra.mxu0 %v1178
    %1405 = vmatprep.subr.bf16.mxu0 %v1183
    %1406 = vmatpush1.bf16.msra.mxu0 %v1182
    %1407 = vmatprep.subr.bf16.mxu0 %v1187
    %1408 = vmatpush1.bf16.msra.mxu0 %v1186
    %1409 = vmatprep.subr.bf16.mxu0 %v1191
    %1410 = vmatpush1.bf16.msra.mxu0 %v1190
    %1411 = vmatprep.subr.bf16.mxu0 %v1195
    %1412 = vmatpush1.bf16.msra.mxu0 %v1194
    %1413 = vmatprep.subr.bf16.mxu0 %v1199
    %1414 = vmatpush1.bf16.msra.mxu0 %v1198
    %1415 = vmatprep.subr.bf16.mxu0 %v1203
    %1416 = vmatpush1.bf16.msra.mxu0 %v1202
    %1417 = vmatprep.subr.bf16.mxu0 %v1207
    %1418 = vmatpush1.bf16.msra.mxu0 %v1206
    %1419 = vmatprep.subr.bf16.mxu0 %v1211
    %1420 = vmatpush1.bf16.msra.mxu0 %v1210
    %1421 = vmatprep.subr.bf16.mxu0 %v1215
    %1422 = vmatpush1.bf16.msra.mxu0 %v1214
    %1423 = vmatprep.subr.bf16.mxu0 %v1219
    %1424 = vmatpush1.bf16.msra.mxu0 %v1218
    %1425 = vmatprep.mubr.bf16.mxu0 %v559
    %1426 = vmatmul.mubr.bf16.gmra.mrb[0].mxu0 %v558
    %v1427 = vpop.f32.mrb[0].mxu0
    %v1428 = vadd.f32 %v1385, %v1427
    %v1429 = vpop.f32.mrb[0].mxu0
    %v1430 = vadd.f32 %v1387, %v1429
    %v1431 = vpop.f32.mrb[0].mxu0
    %v1432 = vadd.f32 %v1389, %v1431
    %v1433 = vpop.f32.mrb[0].mxu0
    %v1434 = vadd.f32 %v1391, %v1433
    %1435 = vdwg.mxu0
    %1436 = vmatprep.subr.bf16.mxu0 %v1097
    %1437 = vmatpush1.bf16.msra.mxu0 %v1096
    %1438 = vmatprep.subr.bf16.mxu0 %v1101
    %1439 = vmatpush1.bf16.msra.mxu0 %v1100
    %1440 = vmatprep.subr.bf16.mxu0 %v1105
    %1441 = vmatpush1.bf16.msra.mxu0 %v1104
    %1442 = vmatprep.subr.bf16.mxu0 %v1109
    %1443 = vmatpush1.bf16.msra.mxu0 %v1108
    %1444 = vmatprep.subr.bf16.mxu0 %v1113
    %1445 = vmatpush1.bf16.msra.mxu0 %v1112
    %1446 = vmatprep.subr.bf16.mxu0 %v1117
    %1447 = vmatpush1.bf16.msra.mxu0 %v1116
    %1448 = vmatprep.subr.bf16.mxu0 %v1121
    %1449 = vmatpush1.bf16.msra.mxu0 %v1120
    %1450 = vmatprep.subr.bf16.mxu0 %v1125
    %1451 = vmatpush1.bf16.msra.mxu0 %v1124
    %1452 = vmatprep.subr.bf16.mxu0 %v1129
    %1453 = vmatpush1.bf16.msra.mxu0 %v1128
    %1454 = vmatprep.subr.bf16.mxu0 %v1133
    %1455 = vmatpush1.bf16.msra.mxu0 %v1132
    %1456 = vmatprep.subr.bf16.mxu0 %v1137
    %1457 = vmatpush1.bf16.msra.mxu0 %v1136
    %1458 = vmatprep.subr.bf16.mxu0 %v1141
    %1459 = vmatpush1.bf16.msra.mxu0 %v1140
    %1460 = vmatprep.subr.bf16.mxu0 %v1145
    %1461 = vmatpush1.bf16.msra.mxu0 %v1144
    %1462 = vmatprep.subr.bf16.mxu0 %v1149
    %1463 = vmatpush1.bf16.msra.mxu0 %v1148
    %1464 = vmatprep.subr.bf16.mxu0 %v1153
    %1465 = vmatpush1.bf16.msra.mxu0 %v1152
    %1466 = vmatprep.subr.bf16.mxu0 %v1157
    %1467 = vmatpush1.bf16.msra.mxu0 %v1156
    %1468 = vmatprep.mubr.bf16.mxu0 %v557
    %1469 = vmatmul.mubr.bf16.gmra.mrb[0].mxu0 %v556
    %v1470 = vpop.f32.mrb[0].mxu0
    %v1471 = vadd.f32 %v701, %v1470
    %v1472 = vpop.f32.mrb[0].mxu0
    %v1473 = vadd.f32 %v705, %v1472
    %v1474 = vpop.f32.mrb[0].mxu0
    %v1475 = vadd.f32 %v701, %v1474
    %v1476 = vpop.f32.mrb[0].mxu0
    %v1477 = vadd.f32 %v705, %v1476
    %1478 = vdwg.mxu0
    %1479 = vmatprep.subr.bf16.mxu0 %v1161
    %1480 = vmatpush1.bf16.msra.mxu0 %v1160
    %1481 = vmatprep.subr.bf16.mxu0 %v1165
    %1482 = vmatpush1.bf16.msra.mxu0 %v1164
    %1483 = vmatprep.subr.bf16.mxu0 %v1169
    %1484 = vmatpush1.bf16.msra.mxu0 %v1168
    %1485 = vmatprep.subr.bf16.mxu0 %v1173
    %1486 = vmatpush1.bf16.msra.mxu0 %v1172
    %1487 = vmatprep.subr.bf16.mxu0 %v1177
    %1488 = vmatpush1.bf16.msra.mxu0 %v1176
    %1489 = vmatprep.subr.bf16.mxu0 %v1181
    %1490 = vmatpush1.bf16.msra.mxu0 %v1180
    %1491 = vmatprep.subr.bf16.mxu0 %v1185
    %1492 = vmatpush1.bf16.msra.mxu0 %v1184
    %1493 = vmatprep.subr.bf16.mxu0 %v1189
    %1494 = vmatpush1.bf16.msra.mxu0 %v1188
    %1495 = vmatprep.subr.bf16.mxu0 %v1193
    %1496 = vmatpush1.bf16.msra.mxu0 %v1192
    %1497 = vmatprep.subr.bf16.mxu0 %v1197
    %1498 = vmatpush1.bf16.msra.mxu0 %v1196
    %1499 = vmatprep.subr.bf16.mxu0 %v1201
    %1500 = vmatpush1.bf16.msra.mxu0 %v1200
    %1501 = vmatprep.subr.bf16.mxu0 %v1205
    %1502 = vmatpush1.bf16.msra.mxu0 %v1204
    %1503 = vmatprep.subr.bf16.mxu0 %v1209
    %1504 = vmatpush1.bf16.msra.mxu0 %v1208
    %1505 = vmatprep.subr.bf16.mxu0 %v1213
    %1506 = vmatpush1.bf16.msra.mxu0 %v1212
    %1507 = vmatprep.subr.bf16.mxu0 %v1217
    %1508 = vmatpush1.bf16.msra.mxu0 %v1216
    %1509 = vmatprep.subr.bf16.mxu0 %v1221
    %1510 = vmatpush1.bf16.msra.mxu0 %v1220
    %1511 = vmatprep.mubr.bf16.mxu0 %v559
    %1512 = vmatmul.mubr.bf16.gmra.mrb[0].mxu0 %v558
    %v1513 = vpop.f32.mrb[0].mxu0
    %v1514 = vadd.f32 %v1471, %v1513
    %v1515 = vpop.f32.mrb[0].mxu0
    %v1516 = vadd.f32 %v1473, %v1515
    %v1517 = vpop.f32.mrb[0].mxu0
    %v1518 = vadd.f32 %v1475, %v1517
    %v1519 = vpop.f32.mrb[0].mxu0
    %v1520 = vadd.f32 %v1477, %v1519
    %1521 = vdwg.mxu0
    %vm1522 = vcmp.gt.f32.partialorder %v1428, 0.0
    %vm1523 = vcmp.gt.f32.partialorder %v1430, 0.0
    %vm1524 = vcmp.gt.f32.partialorder %v1514, 0.0
    %vm1525 = vcmp.gt.f32.partialorder %v1516, 0.0
    %vm1526 = vcmp.gt.f32.partialorder %v1432, 0.0
    %vm1527 = vcmp.gt.f32.partialorder %v1434, 0.0
    %vm1528 = vcmp.gt.f32.partialorder %v1518, 0.0
    %vm1529 = vcmp.gt.f32.partialorder %v1520, 0.0
    %v1530 = vmul.f32 %v1428, 0.2
    %v1531 = vmul.f32 %v1430, 0.2
    %v1532 = vmul.f32 %v1514, 0.2
    %v1533 = vmul.f32 %v1516, 0.2
    %v1534 = vmul.f32 %v1432, 0.2
    %v1535 = vmul.f32 %v1434, 0.2
    %v1536 = vmul.f32 %v1518, 0.2
    %v1537 = vmul.f32 %v1520, 0.2
    %v1538 = vsel %vm1522, %v1428, %v1530
    %v1539 = vsel %vm1523, %v1430, %v1531
    %v1540 = vsel %vm1524, %v1514, %v1532
    %v1541 = vsel %vm1525, %v1516, %v1533
    %v1542 = vsel %vm1526, %v1432, %v1534
    %v1543 = vsel %vm1527, %v1434, %v1535
    %v1544 = vsel %vm1528, %v1518, %v1536
    %v1545 = vsel %vm1529, %v1520, %v1537
    %v1546 = vpack.c.bf16 %v1542, %v1538
    %v1547 = vpack.c.bf16 %v1543, %v1539
    %v1548 = vpack.c.bf16 %v1544, %v1540
    %v1549 = vpack.c.bf16 %v1545, %v1541
    %v1550 = vld [vmem:[%s5] sm:$0xff]
    %v1551 = vld [vmem:[%s5 + $0x8] sm:$0xff]
    %v1552 = vld [vmem:[%s5 + $0x10] sm:$0xff]
    %v1553 = vld [vmem:[%s5 + $0x18] sm:$0xf]
    %v1554 = vld [vmem:[%s5 + $0x1c] sm:$0xff]
    %v1555 = vld [vmem:[%s5 + $0x24] sm:$0xff]
    %v1556 = vld [vmem:[%s5 + $0x2c] sm:$0xff]
    %v1557 = vld [vmem:[%s5 + $0x34] sm:$0xf]
    %v1558 = vld [vmem:[%s5 + $0x38] sm:$0xff]
    %v1559 = vld [vmem:[%s5 + $0x40] sm:$0xff]
    %v1560 = vld [vmem:[%s5 + $0x48] sm:$0xff]
    %v1561 = vld [vmem:[%s5 + $0x50] sm:$0xf]
    %v1562 = vld [vmem:[%s5 + $0x54] sm:$0xff]
    %v1563 = vld [vmem:[%s5 + $0x5c] sm:$0xff]
    %v1564 = vld [vmem:[%s5 + $0x64] sm:$0xff]
    %v1565 = vld [vmem:[%s5 + $0x6c] sm:$0xf]
    %v1566 = vld [vmem:[%s5 + $0x70] sm:$0xff]
    %v1567 = vld [vmem:[%s5 + $0x78] sm:$0xff]
    %v1568 = vld [vmem:[%s5 + $0x80] sm:$0xff]
    %v1569 = vld [vmem:[%s5 + $0x88] sm:$0xf]
    %v1570 = vld [vmem:[%s5 + $0x8c] sm:$0xff]
    %v1571 = vld [vmem:[%s5 + $0x94] sm:$0xff]
    %v1572 = vld [vmem:[%s5 + $0x9c] sm:$0xff]
    %v1573 = vld [vmem:[%s5 + $0xa4] sm:$0xf]
    %v1574 = vld [vmem:[%s5 + $0xa8] sm:$0xff]
    %v1575 = vld [vmem:[%s5 + $0xb0] sm:$0xff]
    %v1576 = vld [vmem:[%s5 + $0xb8] sm:$0xff]
    %v1577 = vld [vmem:[%s5 + $0xc0] sm:$0xf]
    %v1578 = vld [vmem:[%s5 + $0xc4] sm:$0xff]
    %v1579 = vld [vmem:[%s5 + $0xcc] sm:$0xff]
    %v1580 = vld [vmem:[%s5 + $0xd4] sm:$0xff]
    %v1581 = vld [vmem:[%s5 + $0xdc] sm:$0xf]
    %v1582 = vld [vmem:[%s5 + $0xe0] sm:$0xff]
    %v1583 = vld [vmem:[%s5 + $0xe8] sm:$0xff]
    %v1584 = vld [vmem:[%s5 + $0xf0] sm:$0xff]
    %v1585 = vld [vmem:[%s5 + $0xf8] sm:$0xf]
    %v1586 = vld [vmem:[%s5 + $0xfc] sm:$0xff]
    %v1587 = vld [vmem:[%s5 + $0x104] sm:$0xff]
    %v1588 = vld [vmem:[%s5 + $0x10c] sm:$0xff]
    %v1589 = vld [vmem:[%s5 + $0x114] sm:$0xf]
    %v1590 = vld [vmem:[%s5 + $0x118] sm:$0xff]
    %v1591 = vld [vmem:[%s5 + $0x120] sm:$0xff]
    %v1592 = vld [vmem:[%s5 + $0x128] sm:$0xff]
    %v1593 = vld [vmem:[%s5 + $0x130] sm:$0xf]
    %v1594 = vld [vmem:[%s5 + $0x134] sm:$0xff]
    %v1595 = vld [vmem:[%s5 + $0x13c] sm:$0xff]
    %v1596 = vld [vmem:[%s5 + $0x144] sm:$0xff]
    %v1597 = vld [vmem:[%s5 + $0x14c] sm:$0xf]
    %v1598 = vld [vmem:[%s5 + $0x150] sm:$0xff]
    %v1599 = vld [vmem:[%s5 + $0x158] sm:$0xff]
    %v1600 = vld [vmem:[%s5 + $0x160] sm:$0xff]
    %v1601 = vld [vmem:[%s5 + $0x168] sm:$0xf]
    %v1602 = vld [vmem:[%s5 + $0x16c] sm:$0xff]
    %v1603 = vld [vmem:[%s5 + $0x174] sm:$0xff]
    %v1604 = vld [vmem:[%s5 + $0x17c] sm:$0xff]
    %v1605 = vld [vmem:[%s5 + $0x184] sm:$0xf]
    %v1606 = vld [vmem:[%s5 + $0x188] sm:$0xff]
    %v1607 = vld [vmem:[%s5 + $0x190] sm:$0xff]
    %v1608 = vld [vmem:[%s5 + $0x198] sm:$0xff]
    %v1609 = vld [vmem:[%s5 + $0x1a0] sm:$0xf]
    %v1610 = vld [vmem:[%s5 + $0x1a4] sm:$0xff]
    %v1611 = vld [vmem:[%s5 + $0x1ac] sm:$0xff]
    %v1612 = vld [vmem:[%s5 + $0x1b4] sm:$0xff]
    %v1613 = vld [vmem:[%s5 + $0x1bc] sm:$0xf]
    %v1614 = vld [vmem:[%s5 + $0x1c0] sm:$0xff]
    %v1615 = vld [vmem:[%s5 + $0x1c8] sm:$0xff]
    %v1616 = vld [vmem:[%s5 + $0x1d0] sm:$0xff]
    %v1617 = vld [vmem:[%s5 + $0x1d8] sm:$0xf]
    %v1618 = vld [vmem:[%s5 + $0x1dc] sm:$0xff]
    %v1619 = vld [vmem:[%s5 + $0x1e4] sm:$0xff]
    %v1620 = vld [vmem:[%s5 + $0x1ec] sm:$0xff]
    %v1621 = vld [vmem:[%s5 + $0x1f4] sm:$0xf]
    %v1622 = vld [vmem:[%s5 + $0x1f8] sm:$0xff]
    %v1623 = vld [vmem:[%s5 + $0x200] sm:$0xff]
    %v1624 = vld [vmem:[%s5 + $0x208] sm:$0xff]
    %v1625 = vld [vmem:[%s5 + $0x210] sm:$0xf]
    %v1626 = vld [vmem:[%s5 + $0x214] sm:$0xff]
    %v1627 = vld [vmem:[%s5 + $0x21c] sm:$0xff]
    %v1628 = vld [vmem:[%s5 + $0x224] sm:$0xff]
    %v1629 = vld [vmem:[%s5 + $0x22c] sm:$0xf]
    %v1630 = vld [vmem:[%s5 + $0x230] sm:$0xff]
    %v1631 = vld [vmem:[%s5 + $0x238] sm:$0xff]
    %v1632 = vld [vmem:[%s5 + $0x240] sm:$0xff]
    %v1633 = vld [vmem:[%s5 + $0x248] sm:$0xf]
    %v1634 = vld [vmem:[%s5 + $0x24c] sm:$0xff]
    %v1635 = vld [vmem:[%s5 + $0x254] sm:$0xff]
    %v1636 = vld [vmem:[%s5 + $0x25c] sm:$0xff]
    %v1637 = vld [vmem:[%s5 + $0x264] sm:$0xf]
    %v1638 = vld [vmem:[%s5 + $0x268] sm:$0xff]
    %v1639 = vld [vmem:[%s5 + $0x270] sm:$0xff]
    %v1640 = vld [vmem:[%s5 + $0x278] sm:$0xff]
    %v1641 = vld [vmem:[%s5 + $0x280] sm:$0xf]
    %v1642 = vld [vmem:[%s5 + $0x284] sm:$0xff]
    %v1643 = vld [vmem:[%s5 + $0x28c] sm:$0xff]
    %v1644 = vld [vmem:[%s5 + $0x294] sm:$0xff]
    %v1645 = vld [vmem:[%s5 + $0x29c] sm:$0xf]
    %v1646 = vld [vmem:[%s5 + $0x2a0] sm:$0xff]
    %v1647 = vld [vmem:[%s5 + $0x2a8] sm:$0xff]
    %v1648 = vld [vmem:[%s5 + $0x2b0] sm:$0xff]
    %v1649 = vld [vmem:[%s5 + $0x2b8] sm:$0xf]
    %v1650 = vld [vmem:[%s5 + $0x2bc] sm:$0xff]
    %v1651 = vld [vmem:[%s5 + $0x2c4] sm:$0xff]
    %v1652 = vld [vmem:[%s5 + $0x2cc] sm:$0xff]
    %v1653 = vld [vmem:[%s5 + $0x2d4] sm:$0xf]
    %v1654 = vld [vmem:[%s5 + $0x2d8] sm:$0xff]
    %v1655 = vld [vmem:[%s5 + $0x2e0] sm:$0xff]
    %v1656 = vld [vmem:[%s5 + $0x2e8] sm:$0xff]
    %v1657 = vld [vmem:[%s5 + $0x2f0] sm:$0xf]
    %v1658 = vld [vmem:[%s5 + $0x2f4] sm:$0xff]
    %v1659 = vld [vmem:[%s5 + $0x2fc] sm:$0xff]
    %v1660 = vld [vmem:[%s5 + $0x304] sm:$0xff]
    %v1661 = vld [vmem:[%s5 + $0x30c] sm:$0xf]
    %v1662 = vld [vmem:[%s5 + $0x310] sm:$0xff]
    %v1663 = vld [vmem:[%s5 + $0x318] sm:$0xff]
    %v1664 = vld [vmem:[%s5 + $0x320] sm:$0xff]
    %v1665 = vld [vmem:[%s5 + $0x328] sm:$0xf]
    %v1666 = vld [vmem:[%s5 + $0x32c] sm:$0xff]
    %v1667 = vld [vmem:[%s5 + $0x334] sm:$0xff]
    %v1668 = vld [vmem:[%s5 + $0x33c] sm:$0xff]
    %v1669 = vld [vmem:[%s5 + $0x344] sm:$0xf]
    %v1670 = vld [vmem:[%s5 + $0x348] sm:$0xff]
    %v1671 = vld [vmem:[%s5 + $0x350] sm:$0xff]
    %v1672 = vld [vmem:[%s5 + $0x358] sm:$0xff]
    %v1673 = vld [vmem:[%s5 + $0x360] sm:$0xf]
    %v1674 = vld [vmem:[%s5 + $0x364] sm:$0xff]
    %v1675 = vld [vmem:[%s5 + $0x36c] sm:$0xff]
    %v1676 = vld [vmem:[%s5 + $0x374] sm:$0xff]
    %v1677 = vld [vmem:[%s5 + $0x37c] sm:$0xf]
    %v1678 = vld [vmem:[%s5 + $0x380] sm:$0xff]
    %v1679 = vld [vmem:[%s5 + $0x388] sm:$0xff]
    %v1680 = vld [vmem:[%s5 + $0x390] sm:$0xff]
    %v1681 = vld [vmem:[%s5 + $0x398] sm:$0xf]
    %v1682 = vld [vmem:[%s5 + $0x39c] sm:$0xff]
    %v1683 = vld [vmem:[%s5 + $0x3a4] sm:$0xff]
    %v1684 = vld [vmem:[%s5 + $0x3ac] sm:$0xff]
    %v1685 = vld [vmem:[%s5 + $0x3b4] sm:$0xf]
    %v1686 = vld [vmem:[%s5 + $0x3b8] sm:$0xff]
    %v1687 = vld [vmem:[%s5 + $0x3c0] sm:$0xff]
    %v1688 = vld [vmem:[%s5 + $0x3c8] sm:$0xff]
    %v1689 = vld [vmem:[%s5 + $0x3d0] sm:$0xf]
    %v1690 = vld [vmem:[%s5 + $0x3d4] sm:$0xff]
    %v1691 = vld [vmem:[%s5 + $0x3dc] sm:$0xff]
    %v1692 = vld [vmem:[%s5 + $0x3e4] sm:$0xff]
    %v1693 = vld [vmem:[%s5 + $0x3ec] sm:$0xf]
    %v1694 = vld [vmem:[%s5 + $0x3f0] sm:$0xff]
    %v1695 = vld [vmem:[%s5 + $0x3f8] sm:$0xff]
    %v1696 = vld [vmem:[%s5 + $0x400] sm:$0xff]
    %v1697 = vld [vmem:[%s5 + $0x408] sm:$0xf]
    %v1698 = vld [vmem:[%s5 + $0x40c] sm:$0xff]
    %v1699 = vld [vmem:[%s5 + $0x414] sm:$0xff]
    %v1700 = vld [vmem:[%s5 + $0x41c] sm:$0xff]
    %v1701 = vld [vmem:[%s5 + $0x424] sm:$0xf]
    %v1702 = vld [vmem:[%s5 + $0x428] sm:$0xff]
    %v1703 = vld [vmem:[%s5 + $0x430] sm:$0xff]
    %v1704 = vld [vmem:[%s5 + $0x438] sm:$0xff]
    %v1705 = vld [vmem:[%s5 + $0x440] sm:$0xf]
    %v1706 = vld [vmem:[%s5 + $0x444] sm:$0xff]
    %v1707 = vld [vmem:[%s5 + $0x44c] sm:$0xff]
    %v1708 = vld [vmem:[%s5 + $0x454] sm:$0xff]
    %v1709 = vld [vmem:[%s5 + $0x45c] sm:$0xf]
    %v1710 = vld [vmem:[%s5 + $0x460] sm:$0xff]
    %v1711 = vld [vmem:[%s5 + $0x468] sm:$0xff]
    %v1712 = vld [vmem:[%s5 + $0x470] sm:$0xff]
    %v1713 = vld [vmem:[%s5 + $0x478] sm:$0xf]
    %v1714 = vld [vmem:[%s5 + $0x47c] sm:$0xff]
    %v1715 = vld [vmem:[%s5 + $0x484] sm:$0xff]
    %v1716 = vld [vmem:[%s5 + $0x48c] sm:$0xff]
    %v1717 = vld [vmem:[%s5 + $0x494] sm:$0xf]
    %v1718 = vld [vmem:[%s5 + $0x498] sm:$0xff]
    %v1719 = vld [vmem:[%s5 + $0x4a0] sm:$0xff]
    %v1720 = vld [vmem:[%s5 + $0x4a8] sm:$0xff]
    %v1721 = vld [vmem:[%s5 + $0x4b0] sm:$0xf]
    %v1722 = vld [vmem:[%s5 + $0x4b4] sm:$0xff]
    %v1723 = vld [vmem:[%s5 + $0x4bc] sm:$0xff]
    %v1724 = vld [vmem:[%s5 + $0x4c4] sm:$0xff]
    %v1725 = vld [vmem:[%s5 + $0x4cc] sm:$0xf]
    %v1726 = vld [vmem:[%s5 + $0x4d0] sm:$0xff]
    %v1727 = vld [vmem:[%s5 + $0x4d8] sm:$0xff]
    %v1728 = vld [vmem:[%s5 + $0x4e0] sm:$0xff]
    %v1729 = vld [vmem:[%s5 + $0x4e8] sm:$0xf]
    %v1730 = vld [vmem:[%s5 + $0x4ec] sm:$0xff]
    %v1731 = vld [vmem:[%s5 + $0x4f4] sm:$0xff]
    %v1732 = vld [vmem:[%s5 + $0x4fc] sm:$0xff]
    %v1733 = vld [vmem:[%s5 + $0x504] sm:$0xf]
    %v1734 = vld [vmem:[%s5 + $0x508] sm:$0xff]
    %v1735 = vld [vmem:[%s5 + $0x510] sm:$0xff]
    %v1736 = vld [vmem:[%s5 + $0x518] sm:$0xff]
    %v1737 = vld [vmem:[%s5 + $0x520] sm:$0xf]
    %v1738 = vld [vmem:[%s5 + $0x524] sm:$0xff]
    %v1739 = vld [vmem:[%s5 + $0x52c] sm:$0xff]
    %v1740 = vld [vmem:[%s5 + $0x534] sm:$0xff]
    %v1741 = vld [vmem:[%s5 + $0x53c] sm:$0xf]
    %v1742 = vld [vmem:[%s5 + $0x540] sm:$0xff]
    %v1743 = vld [vmem:[%s5 + $0x548] sm:$0xff]
    %v1744 = vld [vmem:[%s5 + $0x550] sm:$0xff]
    %v1745 = vld [vmem:[%s5 + $0x558] sm:$0xf]
    %v1746 = vld [vmem:[%s5 + $0x55c] sm:$0xff]
    %v1747 = vld [vmem:[%s5 + $0x564] sm:$0xff]
    %v1748 = vld [vmem:[%s5 + $0x56c] sm:$0xff]
    %v1749 = vld [vmem:[%s5 + $0x574] sm:$0xf]
    %v1750 = vld [vmem:[%s5 + $0x578] sm:$0xff]
    %v1751 = vld [vmem:[%s5 + $0x580] sm:$0xff]
    %v1752 = vld [vmem:[%s5 + $0x588] sm:$0xff]
    %v1753 = vld [vmem:[%s5 + $0x590] sm:$0xf]
    %v1754 = vld [vmem:[%s5 + $0x594] sm:$0xff]
    %v1755 = vld [vmem:[%s5 + $0x59c] sm:$0xff]
    %v1756 = vld [vmem:[%s5 + $0x5a4] sm:$0xff]
    %v1757 = vld [vmem:[%s5 + $0x5ac] sm:$0xf]
    %v1758 = vld [vmem:[%s5 + $0x5b0] sm:$0xff]
    %v1759 = vld [vmem:[%s5 + $0x5b8] sm:$0xff]
    %v1760 = vld [vmem:[%s5 + $0x5c0] sm:$0xff]
    %v1761 = vld [vmem:[%s5 + $0x5c8] sm:$0xf]
    %v1762 = vld [vmem:[%s5 + $0x5cc] sm:$0xff]
    %v1763 = vld [vmem:[%s5 + $0x5d4] sm:$0xff]
    %v1764 = vld [vmem:[%s5 + $0x5dc] sm:$0xff]
    %v1765 = vld [vmem:[%s5 + $0x5e4] sm:$0xf]
    %v1766 = vld [vmem:[%s5 + $0x5e8] sm:$0xff]
    %v1767 = vld [vmem:[%s5 + $0x5f0] sm:$0xff]
    %v1768 = vld [vmem:[%s5 + $0x5f8] sm:$0xff]
    %v1769 = vld [vmem:[%s5 + $0x600] sm:$0xf]
    %v1770 = vld [vmem:[%s5 + $0x604] sm:$0xff]
    %v1771 = vld [vmem:[%s5 + $0x60c] sm:$0xff]
    %v1772 = vld [vmem:[%s5 + $0x614] sm:$0xff]
    %v1773 = vld [vmem:[%s5 + $0x61c] sm:$0xf]
    %v1774 = vld [vmem:[%s5 + $0x620] sm:$0xff]
    %v1775 = vld [vmem:[%s5 + $0x628] sm:$0xff]
    %v1776 = vld [vmem:[%s5 + $0x630] sm:$0xff]
    %v1777 = vld [vmem:[%s5 + $0x638] sm:$0xf]
    %v1778 = vld [vmem:[%s5 + $0x63c] sm:$0xff]
    %v1779 = vld [vmem:[%s5 + $0x644] sm:$0xff]
    %v1780 = vld [vmem:[%s5 + $0x64c] sm:$0xff]
    %v1781 = vld [vmem:[%s5 + $0x654] sm:$0xf]
    %v1782 = vld [vmem:[%s5 + $0x658] sm:$0xff]
    %v1783 = vld [vmem:[%s5 + $0x660] sm:$0xff]
    %v1784 = vld [vmem:[%s5 + $0x668] sm:$0xff]
    %v1785 = vld [vmem:[%s5 + $0x670] sm:$0xf]
    %v1786 = vld [vmem:[%s5 + $0x674] sm:$0xff]
    %v1787 = vld [vmem:[%s5 + $0x67c] sm:$0xff]
    %v1788 = vld [vmem:[%s5 + $0x684] sm:$0xff]
    %v1789 = vld [vmem:[%s5 + $0x68c] sm:$0xf]
    %v1790 = vld [vmem:[%s5 + $0x690] sm:$0xff]
    %v1791 = vld [vmem:[%s5 + $0x698] sm:$0xff]
    %v1792 = vld [vmem:[%s5 + $0x6a0] sm:$0xff]
    %v1793 = vld [vmem:[%s5 + $0x6a8] sm:$0xf]
    %v1794 = vld [vmem:[%s5 + $0x6ac] sm:$0xff]
    %v1795 = vld [vmem:[%s5 + $0x6b4] sm:$0xff]
    %v1796 = vld [vmem:[%s5 + $0x6bc] sm:$0xff]
    %v1797 = vld [vmem:[%s5 + $0x6c4] sm:$0xf]
    %v1798 = vld [vmem:[%s5 + $0x6c8] sm:$0xff]
    %v1799 = vld [vmem:[%s5 + $0x6d0] sm:$0xff]
    %v1800 = vld [vmem:[%s5 + $0x6d8] sm:$0xff]
    %v1801 = vld [vmem:[%s5 + $0x6e0] sm:$0xf]
    %v1802 = vld [vmem:[%s5 + $0x6e4] sm:$0xff]
    %v1803 = vld [vmem:[%s5 + $0x6ec] sm:$0xff]
    %v1804 = vld [vmem:[%s5 + $0x6f4] sm:$0xff]
    %v1805 = vld [vmem:[%s5 + $0x6fc] sm:$0xf]
    %v1806 = vld [vmem:[%s6] sm:$0xff]
    %v1808 = vlaneseq
    %v1809 = vshrl.u32 %v1808, 7
    %v1810 = vsub.s32 0, %v1809
    %v1811 = vrot.slane %v1806, %v1810
    %v1812 = vlaneseq
    %v1813 = vshrl.u32 %v1812, 7
    %v1814 = vsub.s32 1, %v1813
    %v1815 = vrot.slane %v1806, %v1814
    %v1816 = vlaneseq
    %v1817 = vshrl.u32 %v1816, 7
    %v1818 = vsub.s32 2, %v1817
    %v1819 = vrot.slane %v1806, %v1818
    %v1820 = vlaneseq
    %v1821 = vshrl.u32 %v1820, 7
    %v1822 = vsub.s32 3, %v1821
    %v1823 = vrot.slane %v1806, %v1822
    %v1824 = vlaneseq
    %v1825 = vshrl.u32 %v1824, 7
    %v1826 = vsub.s32 4, %v1825
    %v1827 = vrot.slane %v1806, %v1826
    %v1828 = vlaneseq
    %v1829 = vshrl.u32 %v1828, 7
    %v1830 = vsub.s32 5, %v1829
    %v1831 = vrot.slane %v1806, %v1830
    %v1832 = vlaneseq
    %v1833 = vshrl.u32 %v1832, 7
    %v1834 = vsub.s32 6, %v1833
    %v1835 = vrot.slane %v1806, %v1834
    %v2099 = vunpack.c.l.b16 %v1550
    %v2100 = vunpack.c.h.b16 %v1550
    %v2101 = vunpack.c.l.b16 %v1551
    %v2102 = vunpack.c.h.b16 %v1551
    %v2103 = vunpack.c.l.b16 %v1552
    %v2104 = vunpack.c.h.b16 %v1552
    %v2105 = vunpack.c.l.b16 %v1553
    %v2106 = vunpack.c.l.b16 %v1554
    %v2107 = vunpack.c.h.b16 %v1554
    %v2108 = vunpack.c.l.b16 %v1555
    %v2109 = vunpack.c.h.b16 %v1555
    %v2110 = vunpack.c.l.b16 %v1556
    %v2111 = vunpack.c.h.b16 %v1556
    %v2112 = vunpack.c.l.b16 %v1557
    %v2113 = vunpack.c.l.b16 %v1558
    %v2114 = vunpack.c.h.b16 %v1558
    %v2115 = vunpack.c.l.b16 %v1559
    %v2116 = vunpack.c.h.b16 %v1559
    %v2117 = vunpack.c.l.b16 %v1560
    %v2118 = vunpack.c.h.b16 %v1560
    %v2119 = vunpack.c.l.b16 %v1561
    %v2120 = vunpack.c.l.b16 %v1562
    %v2121 = vunpack.c.h.b16 %v1562
    %v2122 = vunpack.c.l.b16 %v1563
    %v2123 = vunpack.c.h.b16 %v1563
    %v2124 = vunpack.c.l.b16 %v1564
    %v2125 = vunpack.c.h.b16 %v1564
    %v2126 = vunpack.c.l.b16 %v1565
    %v2127 = vunpack.c.l.b16 %v1566
    %v2128 = vunpack.c.h.b16 %v1566
    %v2129 = vunpack.c.l.b16 %v1567
    %v2130 = vunpack.c.h.b16 %v1567
    %v2131 = vunpack.c.l.b16 %v1568
    %v2132 = vunpack.c.h.b16 %v1568
    %v2133 = vunpack.c.l.b16 %v1569
    %v2134 = vunpack.c.l.b16 %v1570
    %v2135 = vunpack.c.h.b16 %v1570
    %v2136 = vunpack.c.l.b16 %v1571
    %v2137 = vunpack.c.h.b16 %v1571
    %v2138 = vunpack.c.l.b16 %v1572
    %v2139 = vunpack.c.h.b16 %v1572
    %v2140 = vunpack.c.l.b16 %v1573
    %v2141 = vunpack.c.l.b16 %v1574
    %v2142 = vunpack.c.h.b16 %v1574
    %v2143 = vunpack.c.l.b16 %v1575
    %v2144 = vunpack.c.h.b16 %v1575
    %v2145 = vunpack.c.l.b16 %v1576
    %v2146 = vunpack.c.h.b16 %v1576
    %v2147 = vunpack.c.l.b16 %v1577
    %v2148 = vunpack.c.l.b16 %v1578
    %v2149 = vunpack.c.h.b16 %v1578
    %v2150 = vunpack.c.l.b16 %v1579
    %v2151 = vunpack.c.h.b16 %v1579
    %v2152 = vunpack.c.l.b16 %v1580
    %v2153 = vunpack.c.h.b16 %v1580
    %v2154 = vunpack.c.l.b16 %v1581
    %v2155 = vunpack.c.l.b16 %v1582
    %v2156 = vunpack.c.h.b16 %v1582
    %v2157 = vunpack.c.l.b16 %v1583
    %v2158 = vunpack.c.h.b16 %v1583
    %v2159 = vunpack.c.l.b16 %v1584
    %v2160 = vunpack.c.h.b16 %v1584
    %v2161 = vunpack.c.l.b16 %v1585
    %v2162 = vunpack.c.l.b16 %v1586
    %v2163 = vunpack.c.h.b16 %v1586
    %v2164 = vunpack.c.l.b16 %v1587
    %v2165 = vunpack.c.h.b16 %v1587
    %v2166 = vunpack.c.l.b16 %v1588
    %v2167 = vunpack.c.h.b16 %v1588
    %v2168 = vunpack.c.l.b16 %v1589
    %v2169 = vunpack.c.l.b16 %v1590
    %v2170 = vunpack.c.h.b16 %v1590
    %v2171 = vunpack.c.l.b16 %v1591
    %v2172 = vunpack.c.h.b16 %v1591
    %v2173 = vunpack.c.l.b16 %v1592
    %v2174 = vunpack.c.h.b16 %v1592
    %v2175 = vunpack.c.l.b16 %v1593
    %v2176 = vunpack.c.l.b16 %v1594
    %v2177 = vunpack.c.h.b16 %v1594
    %v2178 = vunpack.c.l.b16 %v1595
    %v2179 = vunpack.c.h.b16 %v1595
    %v2180 = vunpack.c.l.b16 %v1596
    %v2181 = vunpack.c.h.b16 %v1596
    %v2182 = vunpack.c.l.b16 %v1597
    %v2183 = vunpack.c.l.b16 %v1598
    %v2184 = vunpack.c.h.b16 %v1598
    %v2185 = vunpack.c.l.b16 %v1599
    %v2186 = vunpack.c.h.b16 %v1599
    %v2187 = vunpack.c.l.b16 %v1600
    %v2188 = vunpack.c.h.b16 %v1600
    %v2189 = vunpack.c.l.b16 %v1601
    %v2190 = vunpack.c.l.b16 %v1602
    %v2191 = vunpack.c.h.b16 %v1602
    %v2192 = vunpack.c.l.b16 %v1603
    %v2193 = vunpack.c.h.b16 %v1603
    %v2194 = vunpack.c.l.b16 %v1604
    %v2195 = vunpack.c.h.b16 %v1604
    %v2196 = vunpack.c.l.b16 %v1605
    %v2197 = vunpack.c.l.b16 %v1606
    %v2198 = vunpack.c.h.b16 %v1606
    %v2199 = vunpack.c.l.b16 %v1607
    %v2200 = vunpack.c.h.b16 %v1607
    %v2201 = vunpack.c.l.b16 %v1608
    %v2202 = vunpack.c.h.b16 %v1608
    %v2203 = vunpack.c.l.b16 %v1609
    %v2204 = vunpack.c.l.b16 %v1610
    %v2205 = vunpack.c.h.b16 %v1610
    %v2206 = vunpack.c.l.b16 %v1611
    %v2207 = vunpack.c.h.b16 %v1611
    %v2208 = vunpack.c.l.b16 %v1612
    %v2209 = vunpack.c.h.b16 %v1612
    %v2210 = vunpack.c.l.b16 %v1613
    %v2211 = vunpack.c.l.b16 %v1614
    %v2212 = vunpack.c.h.b16 %v1614
    %v2213 = vunpack.c.l.b16 %v1615
    %v2214 = vunpack.c.h.b16 %v1615
    %v2215 = vunpack.c.l.b16 %v1616
    %v2216 = vunpack.c.h.b16 %v1616
    %v2217 = vunpack.c.l.b16 %v1617
    %v2218 = vunpack.c.l.b16 %v1618
    %v2219 = vunpack.c.h.b16 %v1618
    %v2220 = vunpack.c.l.b16 %v1619
    %v2221 = vunpack.c.h.b16 %v1619
    %v2222 = vunpack.c.l.b16 %v1620
    %v2223 = vunpack.c.h.b16 %v1620
    %v2224 = vunpack.c.l.b16 %v1621
    %v2225 = vunpack.c.l.b16 %v1622
    %v2226 = vunpack.c.h.b16 %v1622
    %v2227 = vunpack.c.l.b16 %v1623
    %v2228 = vunpack.c.h.b16 %v1623
    %v2229 = vunpack.c.l.b16 %v1624
    %v2230 = vunpack.c.h.b16 %v1624
    %v2231 = vunpack.c.l.b16 %v1625
    %v2232 = vunpack.c.l.b16 %v1626
    %v2233 = vunpack.c.h.b16 %v1626
    %v2234 = vunpack.c.l.b16 %v1627
    %v2235 = vunpack.c.h.b16 %v1627
    %v2236 = vunpack.c.l.b16 %v1628
    %v2237 = vunpack.c.h.b16 %v1628
    %v2238 = vunpack.c.l.b16 %v1629
    %v2239 = vunpack.c.l.b16 %v1630
    %v2240 = vunpack.c.h.b16 %v1630
    %v2241 = vunpack.c.l.b16 %v1631
    %v2242 = vunpack.c.h.b16 %v1631
    %v2243 = vunpack.c.l.b16 %v1632
    %v2244 = vunpack.c.h.b16 %v1632
    %v2245 = vunpack.c.l.b16 %v1633
    %v2246 = vunpack.c.l.b16 %v1634
    %v2247 = vunpack.c.h.b16 %v1634
    %v2248 = vunpack.c.l.b16 %v1635
    %v2249 = vunpack.c.h.b16 %v1635
    %v2250 = vunpack.c.l.b16 %v1636
    %v2251 = vunpack.c.h.b16 %v1636
    %v2252 = vunpack.c.l.b16 %v1637
    %v2253 = vunpack.c.l.b16 %v1638
    %v2254 = vunpack.c.h.b16 %v1638
    %v2255 = vunpack.c.l.b16 %v1639
    %v2256 = vunpack.c.h.b16 %v1639
    %v2257 = vunpack.c.l.b16 %v1640
    %v2258 = vunpack.c.h.b16 %v1640
    %v2259 = vunpack.c.l.b16 %v1641
    %v2260 = vunpack.c.l.b16 %v1642
    %v2261 = vunpack.c.h.b16 %v1642
    %v2262 = vunpack.c.l.b16 %v1643
    %v2263 = vunpack.c.h.b16 %v1643
    %v2264 = vunpack.c.l.b16 %v1644
    %v2265 = vunpack.c.h.b16 %v1644
    %v2266 = vunpack.c.l.b16 %v1645
    %v2267 = vunpack.c.l.b16 %v1646
    %v2268 = vunpack.c.h.b16 %v1646
    %v2269 = vunpack.c.l.b16 %v1647
    %v2270 = vunpack.c.h.b16 %v1647
    %v2271 = vunpack.c.l.b16 %v1648
    %v2272 = vunpack.c.h.b16 %v1648
    %v2273 = vunpack.c.l.b16 %v1649
    %v2274 = vunpack.c.l.b16 %v1650
    %v2275 = vunpack.c.h.b16 %v1650
    %v2276 = vunpack.c.l.b16 %v1651
    %v2277 = vunpack.c.h.b16 %v1651
    %v2278 = vunpack.c.l.b16 %v1652
    %v2279 = vunpack.c.h.b16 %v1652
    %v2280 = vunpack.c.l.b16 %v1653
    %v2281 = vunpack.c.l.b16 %v1654
    %v2282 = vunpack.c.h.b16 %v1654
    %v2283 = vunpack.c.l.b16 %v1655
    %v2284 = vunpack.c.h.b16 %v1655
    %v2285 = vunpack.c.l.b16 %v1656
    %v2286 = vunpack.c.h.b16 %v1656
    %v2287 = vunpack.c.l.b16 %v1657
    %v2288 = vunpack.c.l.b16 %v1658
    %v2289 = vunpack.c.h.b16 %v1658
    %v2290 = vunpack.c.l.b16 %v1659
    %v2291 = vunpack.c.h.b16 %v1659
    %v2292 = vunpack.c.l.b16 %v1660
    %v2293 = vunpack.c.h.b16 %v1660
    %v2294 = vunpack.c.l.b16 %v1661
    %v2295 = vunpack.c.l.b16 %v1662
    %v2296 = vunpack.c.h.b16 %v1662
    %v2297 = vunpack.c.l.b16 %v1663
    %v2298 = vunpack.c.h.b16 %v1663
    %v2299 = vunpack.c.l.b16 %v1664
    %v2300 = vunpack.c.h.b16 %v1664
    %v2301 = vunpack.c.l.b16 %v1665
    %v2302 = vunpack.c.l.b16 %v1666
    %v2303 = vunpack.c.h.b16 %v1666
    %v2304 = vunpack.c.l.b16 %v1667
    %v2305 = vunpack.c.h.b16 %v1667
    %v2306 = vunpack.c.l.b16 %v1668
    %v2307 = vunpack.c.h.b16 %v1668
    %v2308 = vunpack.c.l.b16 %v1669
    %v2309 = vunpack.c.l.b16 %v1670
    %v2310 = vunpack.c.h.b16 %v1670
    %v2311 = vunpack.c.l.b16 %v1671
    %v2312 = vunpack.c.h.b16 %v1671
    %v2313 = vunpack.c.l.b16 %v1672
    %v2314 = vunpack.c.h.b16 %v1672
    %v2315 = vunpack.c.l.b16 %v1673
    %v2316 = vunpack.c.l.b16 %v1674
    %v2317 = vunpack.c.h.b16 %v1674
    %v2318 = vunpack.c.l.b16 %v1675
    %v2319 = vunpack.c.h.b16 %v1675
    %v2320 = vunpack.c.l.b16 %v1676
    %v2321 = vunpack.c.h.b16 %v1676
    %v2322 = vunpack.c.l.b16 %v1677
    %v2323 = vunpack.c.l.b16 %v1678
    %v2324 = vunpack.c.h.b16 %v1678
    %v2325 = vunpack.c.l.b16 %v1679
    %v2326 = vunpack.c.h.b16 %v1679
    %v2327 = vunpack.c.l.b16 %v1680
    %v2328 = vunpack.c.h.b16 %v1680
    %v2329 = vunpack.c.l.b16 %v1681
    %v2330 = vunpack.c.l.b16 %v1682
    %v2331 = vunpack.c.h.b16 %v1682
    %v2332 = vunpack.c.l.b16 %v1683
    %v2333 = vunpack.c.h.b16 %v1683
    %v2334 = vunpack.c.l.b16 %v1684
    %v2335 = vunpack.c.h.b16 %v1684
    %v2336 = vunpack.c.l.b16 %v1685
    %v2337 = vunpack.c.l.b16 %v1686
    %v2338 = vunpack.c.h.b16 %v1686
    %v2339 = vunpack.c.l.b16 %v1687
    %v2340 = vunpack.c.h.b16 %v1687
    %v2341 = vunpack.c.l.b16 %v1688
    %v2342 = vunpack.c.h.b16 %v1688
    %v2343 = vunpack.c.l.b16 %v1689
    %v2344 = vunpack.c.l.b16 %v1690
    %v2345 = vunpack.c.h.b16 %v1690
    %v2346 = vunpack.c.l.b16 %v1691
    %v2347 = vunpack.c.h.b16 %v1691
    %v2348 = vunpack.c.l.b16 %v1692
    %v2349 = vunpack.c.h.b16 %v1692
    %v2350 = vunpack.c.l.b16 %v1693
    %v2351 = vunpack.c.l.b16 %v1694
    %v2352 = vunpack.c.h.b16 %v1694
    %v2353 = vunpack.c.l.b16 %v1695
    %v2354 = vunpack.c.h.b16 %v1695
    %v2355 = vunpack.c.l.b16 %v1696
    %v2356 = vunpack.c.h.b16 %v1696
    %v2357 = vunpack.c.l.b16 %v1697
    %v2358 = vunpack.c.l.b16 %v1698
    %v2359 = vunpack.c.h.b16 %v1698
    %v2360 = vunpack.c.l.b16 %v1699
    %v2361 = vunpack.c.h.b16 %v1699
    %v2362 = vunpack.c.l.b16 %v1700
    %v2363 = vunpack.c.h.b16 %v1700
    %v2364 = vunpack.c.l.b16 %v1701
    %v2365 = vunpack.c.l.b16 %v1702
    %v2366 = vunpack.c.h.b16 %v1702
    %v2367 = vunpack.c.l.b16 %v1703
    %v2368 = vunpack.c.h.b16 %v1703
    %v2369 = vunpack.c.l.b16 %v1704
    %v2370 = vunpack.c.h.b16 %v1704
    %v2371 = vunpack.c.l.b16 %v1705
    %v2372 = vunpack.c.l.b16 %v1706
    %v2373 = vunpack.c.h.b16 %v1706
    %v2374 = vunpack.c.l.b16 %v1707
    %v2375 = vunpack.c.h.b16 %v1707
    %v2376 = vunpack.c.l.b16 %v1708
    %v2377 = vunpack.c.h.b16 %v1708
    %v2378 = vunpack.c.l.b16 %v1709
    %v2379 = vunpack.c.l.b16 %v1710
    %v2380 = vunpack.c.h.b16 %v1710
    %v2381 = vunpack.c.l.b16 %v1711
    %v2382 = vunpack.c.h.b16 %v1711
    %v2383 = vunpack.c.l.b16 %v1712
    %v2384 = vunpack.c.h.b16 %v1712
    %v2385 = vunpack.c.l.b16 %v1713
    %v2386 = vunpack.c.l.b16 %v1714
    %v2387 = vunpack.c.h.b16 %v1714
    %v2388 = vunpack.c.l.b16 %v1715
    %v2389 = vunpack.c.h.b16 %v1715
    %v2390 = vunpack.c.l.b16 %v1716
    %v2391 = vunpack.c.h.b16 %v1716
    %v2392 = vunpack.c.l.b16 %v1717
    %v2393 = vunpack.c.l.b16 %v1718
    %v2394 = vunpack.c.h.b16 %v1718
    %v2395 = vunpack.c.l.b16 %v1719
    %v2396 = vunpack.c.h.b16 %v1719
    %v2397 = vunpack.c.l.b16 %v1720
    %v2398 = vunpack.c.h.b16 %v1720
    %v2399 = vunpack.c.l.b16 %v1721
    %v2400 = vunpack.c.l.b16 %v1722
    %v2401 = vunpack.c.h.b16 %v1722
    %v2402 = vunpack.c.l.b16 %v1723
    %v2403 = vunpack.c.h.b16 %v1723
    %v2404 = vunpack.c.l.b16 %v1724
    %v2405 = vunpack.c.h.b16 %v1724
    %v2406 = vunpack.c.l.b16 %v1725
    %v2407 = vunpack.c.l.b16 %v1726
    %v2408 = vunpack.c.h.b16 %v1726
    %v2409 = vunpack.c.l.b16 %v1727
    %v2410 = vunpack.c.h.b16 %v1727
    %v2411 = vunpack.c.l.b16 %v1728
    %v2412 = vunpack.c.h.b16 %v1728
    %v2413 = vunpack.c.l.b16 %v1729
    %v2414 = vunpack.c.l.b16 %v1730
    %v2415 = vunpack.c.h.b16 %v1730
    %v2416 = vunpack.c.l.b16 %v1731
    %v2417 = vunpack.c.h.b16 %v1731
    %v2418 = vunpack.c.l.b16 %v1732
    %v2419 = vunpack.c.h.b16 %v1732
    %v2420 = vunpack.c.l.b16 %v1733
    %v2421 = vunpack.c.l.b16 %v1734
    %v2422 = vunpack.c.h.b16 %v1734
    %v2423 = vunpack.c.l.b16 %v1735
    %v2424 = vunpack.c.h.b16 %v1735
    %v2425 = vunpack.c.l.b16 %v1736
    %v2426 = vunpack.c.h.b16 %v1736
    %v2427 = vunpack.c.l.b16 %v1737
    %v2428 = vunpack.c.l.b16 %v1738
    %v2429 = vunpack.c.h.b16 %v1738
    %v2430 = vunpack.c.l.b16 %v1739
    %v2431 = vunpack.c.h.b16 %v1739
    %v2432 = vunpack.c.l.b16 %v1740
    %v2433 = vunpack.c.h.b16 %v1740
    %v2434 = vunpack.c.l.b16 %v1741
    %v2435 = vunpack.c.l.b16 %v1742
    %v2436 = vunpack.c.h.b16 %v1742
    %v2437 = vunpack.c.l.b16 %v1743
    %v2438 = vunpack.c.h.b16 %v1743
    %v2439 = vunpack.c.l.b16 %v1744
    %v2440 = vunpack.c.h.b16 %v1744
    %v2441 = vunpack.c.l.b16 %v1745
    %v2442 = vunpack.c.l.b16 %v1746
    %v2443 = vunpack.c.h.b16 %v1746
    %v2444 = vunpack.c.l.b16 %v1747
    %v2445 = vunpack.c.h.b16 %v1747
    %v2446 = vunpack.c.l.b16 %v1748
    %v2447 = vunpack.c.h.b16 %v1748
    %v2448 = vunpack.c.l.b16 %v1749
    %v2449 = vunpack.c.l.b16 %v1750
    %v2450 = vunpack.c.h.b16 %v1750
    %v2451 = vunpack.c.l.b16 %v1751
    %v2452 = vunpack.c.h.b16 %v1751
    %v2453 = vunpack.c.l.b16 %v1752
    %v2454 = vunpack.c.h.b16 %v1752
    %v2455 = vunpack.c.l.b16 %v1753
    %v2456 = vunpack.c.l.b16 %v1754
    %v2457 = vunpack.c.h.b16 %v1754
    %v2458 = vunpack.c.l.b16 %v1755
    %v2459 = vunpack.c.h.b16 %v1755
    %v2460 = vunpack.c.l.b16 %v1756
    %v2461 = vunpack.c.h.b16 %v1756
    %v2462 = vunpack.c.l.b16 %v1757
    %v2463 = vunpack.c.l.b16 %v1758
    %v2464 = vunpack.c.h.b16 %v1758
    %v2465 = vunpack.c.l.b16 %v1759
    %v2466 = vunpack.c.h.b16 %v1759
    %v2467 = vunpack.c.l.b16 %v1760
    %v2468 = vunpack.c.h.b16 %v1760
    %v2469 = vunpack.c.l.b16 %v1761
    %v2470 = vunpack.c.l.b16 %v1762
    %v2471 = vunpack.c.h.b16 %v1762
    %v2472 = vunpack.c.l.b16 %v1763
    %v2473 = vunpack.c.h.b16 %v1763
    %v2474 = vunpack.c.l.b16 %v1764
    %v2475 = vunpack.c.h.b16 %v1764
    %v2476 = vunpack.c.l.b16 %v1765
    %v2477 = vunpack.c.l.b16 %v1766
    %v2478 = vunpack.c.h.b16 %v1766
    %v2479 = vunpack.c.l.b16 %v1767
    %v2480 = vunpack.c.h.b16 %v1767
    %v2481 = vunpack.c.l.b16 %v1768
    %v2482 = vunpack.c.h.b16 %v1768
    %v2483 = vunpack.c.l.b16 %v1769
    %v2484 = vunpack.c.l.b16 %v1770
    %v2485 = vunpack.c.h.b16 %v1770
    %v2486 = vunpack.c.l.b16 %v1771
    %v2487 = vunpack.c.h.b16 %v1771
    %v2488 = vunpack.c.l.b16 %v1772
    %v2489 = vunpack.c.h.b16 %v1772
    %v2490 = vunpack.c.l.b16 %v1773
    %v2491 = vunpack.c.l.b16 %v1774
    %v2492 = vunpack.c.h.b16 %v1774
    %v2493 = vunpack.c.l.b16 %v1775
    %v2494 = vunpack.c.h.b16 %v1775
    %v2495 = vunpack.c.l.b16 %v1776
    %v2496 = vunpack.c.h.b16 %v1776
    %v2497 = vunpack.c.l.b16 %v1777
    %v2498 = vunpack.c.l.b16 %v1778
    %v2499 = vunpack.c.h.b16 %v1778
    %v2500 = vunpack.c.l.b16 %v1779
    %v2501 = vunpack.c.h.b16 %v1779
    %v2502 = vunpack.c.l.b16 %v1780
    %v2503 = vunpack.c.h.b16 %v1780
    %v2504 = vunpack.c.l.b16 %v1781
    %v2505 = vunpack.c.l.b16 %v1782
    %v2506 = vunpack.c.h.b16 %v1782
    %v2507 = vunpack.c.l.b16 %v1783
    %v2508 = vunpack.c.h.b16 %v1783
    %v2509 = vunpack.c.l.b16 %v1784
    %v2510 = vunpack.c.h.b16 %v1784
    %v2511 = vunpack.c.l.b16 %v1785
    %v2512 = vunpack.c.l.b16 %v1786
    %v2513 = vunpack.c.h.b16 %v1786
    %v2514 = vunpack.c.l.b16 %v1787
    %v2515 = vunpack.c.h.b16 %v1787
    %v2516 = vunpack.c.l.b16 %v1788
    %v2517 = vunpack.c.h.b16 %v1788
    %v2518 = vunpack.c.l.b16 %v1789
    %v2519 = vunpack.c.l.b16 %v1790
    %v2520 = vunpack.c.h.b16 %v1790
    %v2521 = vunpack.c.l.b16 %v1791
    %v2522 = vunpack.c.h.b16 %v1791
    %v2523 = vunpack.c.l.b16 %v1792
    %v2524 = vunpack.c.h.b16 %v1792
    %v2525 = vunpack.c.l.b16 %v1793
    %v2526 = vunpack.c.l.b16 %v1794
    %v2527 = vunpack.c.h.b16 %v1794
    %v2528 = vunpack.c.l.b16 %v1795
    %v2529 = vunpack.c.h.b16 %v1795
    %v2530 = vunpack.c.l.b16 %v1796
    %v2531 = vunpack.c.h.b16 %v1796
    %v2532 = vunpack.c.l.b16 %v1797
    %v2533 = vunpack.c.l.b16 %v1798
    %v2534 = vunpack.c.h.b16 %v1798
    %v2535 = vunpack.c.l.b16 %v1799
    %v2536 = vunpack.c.h.b16 %v1799
    %v2537 = vunpack.c.l.b16 %v1800
    %v2538 = vunpack.c.h.b16 %v1800
    %v2539 = vunpack.c.l.b16 %v1801
    %v2540 = vunpack.c.l.b16 %v1802
    %v2541 = vunpack.c.h.b16 %v1802
    %v2542 = vunpack.c.l.b16 %v1803
    %v2543 = vunpack.c.h.b16 %v1803
    %v2544 = vunpack.c.l.b16 %v1804
    %v2545 = vunpack.c.h.b16 %v1804
    %v2546 = vunpack.c.l.b16 %v1805
    %v2547 = vpack.c.b16 %v2106, %v2099
    %v2548 = vpack.c.b16 %v2107, %v2100
    %v2549 = vpack.c.b16 %v2108, %v2101
    %v2550 = vpack.c.b16 %v2109, %v2102
    %v2551 = vpack.c.b16 %v2110, %v2103
    %v2552 = vpack.c.b16 %v2111, %v2104
    %v2553 = vpack.c.b16 %v2112, %v2105
    %v2554 = vpack.c.b16 %v2120, %v2113
    %v2555 = vpack.c.b16 %v2121, %v2114
    %v2556 = vpack.c.b16 %v2122, %v2115
    %v2557 = vpack.c.b16 %v2123, %v2116
    %v2558 = vpack.c.b16 %v2124, %v2117
    %v2559 = vpack.c.b16 %v2125, %v2118
    %v2560 = vpack.c.b16 %v2126, %v2119
    %v2561 = vpack.c.b16 %v2134, %v2127
    %v2562 = vpack.c.b16 %v2135, %v2128
    %v2563 = vpack.c.b16 %v2136, %v2129
    %v2564 = vpack.c.b16 %v2137, %v2130
    %v2565 = vpack.c.b16 %v2138, %v2131
    %v2566 = vpack.c.b16 %v2139, %v2132
    %v2567 = vpack.c.b16 %v2140, %v2133
    %v2568 = vpack.c.b16 %v2148, %v2141
    %v2569 = vpack.c.b16 %v2149, %v2142
    %v2570 = vpack.c.b16 %v2150, %v2143
    %v2571 = vpack.c.b16 %v2151, %v2144
    %v2572 = vpack.c.b16 %v2152, %v2145
    %v2573 = vpack.c.b16 %v2153, %v2146
    %v2574 = vpack.c.b16 %v2154, %v2147
    %v2575 = vpack.c.b16 %v2162, %v2155
    %v2576 = vpack.c.b16 %v2163, %v2156
    %v2577 = vpack.c.b16 %v2164, %v2157
    %v2578 = vpack.c.b16 %v2165, %v2158
    %v2579 = vpack.c.b16 %v2166, %v2159
    %v2580 = vpack.c.b16 %v2167, %v2160
    %v2581 = vpack.c.b16 %v2168, %v2161
    %v2582 = vpack.c.b16 %v2176, %v2169
    %v2583 = vpack.c.b16 %v2177, %v2170
    %v2584 = vpack.c.b16 %v2178, %v2171
    %v2585 = vpack.c.b16 %v2179, %v2172
    %v2586 = vpack.c.b16 %v2180, %v2173
    %v2587 = vpack.c.b16 %v2181, %v2174
    %v2588 = vpack.c.b16 %v2182, %v2175
    %v2589 = vpack.c.b16 %v2190, %v2183
    %v2590 = vpack.c.b16 %v2191, %v2184
    %v2591 = vpack.c.b16 %v2192, %v2185
    %v2592 = vpack.c.b16 %v2193, %v2186
    %v2593 = vpack.c.b16 %v2194, %v2187
    %v2594 = vpack.c.b16 %v2195, %v2188
    %v2595 = vpack.c.b16 %v2196, %v2189
    %v2596 = vpack.c.b16 %v2204, %v2197
    %v2597 = vpack.c.b16 %v2205, %v2198
    %v2598 = vpack.c.b16 %v2206, %v2199
    %v2599 = vpack.c.b16 %v2207, %v2200
    %v2600 = vpack.c.b16 %v2208, %v2201
    %v2601 = vpack.c.b16 %v2209, %v2202
    %v2602 = vpack.c.b16 %v2210, %v2203
    %v2603 = vpack.c.b16 %v2218, %v2211
    %v2604 = vpack.c.b16 %v2219, %v2212
    %v2605 = vpack.c.b16 %v2220, %v2213
    %v2606 = vpack.c.b16 %v2221, %v2214
    %v2607 = vpack.c.b16 %v2222, %v2215
    %v2608 = vpack.c.b16 %v2223, %v2216
    %v2609 = vpack.c.b16 %v2224, %v2217
    %v2610 = vpack.c.b16 %v2232, %v2225
    %v2611 = vpack.c.b16 %v2233, %v2226
    %v2612 = vpack.c.b16 %v2234, %v2227
    %v2613 = vpack.c.b16 %v2235, %v2228
    %v2614 = vpack.c.b16 %v2236, %v2229
    %v2615 = vpack.c.b16 %v2237, %v2230
    %v2616 = vpack.c.b16 %v2238, %v2231
    %v2617 = vpack.c.b16 %v2246, %v2239
    %v2618 = vpack.c.b16 %v2247, %v2240
    %v2619 = vpack.c.b16 %v2248, %v2241
    %v2620 = vpack.c.b16 %v2249, %v2242
    %v2621 = vpack.c.b16 %v2250, %v2243
    %v2622 = vpack.c.b16 %v2251, %v2244
    %v2623 = vpack.c.b16 %v2252, %v2245
    %v2624 = vpack.c.b16 %v2260, %v2253
    %v2625 = vpack.c.b16 %v2261, %v2254
    %v2626 = vpack.c.b16 %v2262, %v2255
    %v2627 = vpack.c.b16 %v2263, %v2256
    %v2628 = vpack.c.b16 %v2264, %v2257
    %v2629 = vpack.c.b16 %v2265, %v2258
    %v2630 = vpack.c.b16 %v2266, %v2259
    %v2631 = vpack.c.b16 %v2274, %v2267
    %v2632 = vpack.c.b16 %v2275, %v2268
    %v2633 = vpack.c.b16 %v2276, %v2269
    %v2634 = vpack.c.b16 %v2277, %v2270
    %v2635 = vpack.c.b16 %v2278, %v2271
    %v2636 = vpack.c.b16 %v2279, %v2272
    %v2637 = vpack.c.b16 %v2280, %v2273
    %v2638 = vpack.c.b16 %v2288, %v2281
    %v2639 = vpack.c.b16 %v2289, %v2282
    %v2640 = vpack.c.b16 %v2290, %v2283
    %v2641 = vpack.c.b16 %v2291, %v2284
    %v2642 = vpack.c.b16 %v2292, %v2285
    %v2643 = vpack.c.b16 %v2293, %v2286
    %v2644 = vpack.c.b16 %v2294, %v2287
    %v2645 = vpack.c.b16 %v2302, %v2295
    %v2646 = vpack.c.b16 %v2303, %v2296
    %v2647 = vpack.c.b16 %v2304, %v2297
    %v2648 = vpack.c.b16 %v2305, %v2298
    %v2649 = vpack.c.b16 %v2306, %v2299
    %v2650 = vpack.c.b16 %v2307, %v2300
    %v2651 = vpack.c.b16 %v2308, %v2301
    %v2652 = vpack.c.b16 %v2316, %v2309
    %v2653 = vpack.c.b16 %v2317, %v2310
    %v2654 = vpack.c.b16 %v2318, %v2311
    %v2655 = vpack.c.b16 %v2319, %v2312
    %v2656 = vpack.c.b16 %v2320, %v2313
    %v2657 = vpack.c.b16 %v2321, %v2314
    %v2658 = vpack.c.b16 %v2322, %v2315
    %v2659 = vpack.c.b16 %v2330, %v2323
    %v2660 = vpack.c.b16 %v2331, %v2324
    %v2661 = vpack.c.b16 %v2332, %v2325
    %v2662 = vpack.c.b16 %v2333, %v2326
    %v2663 = vpack.c.b16 %v2334, %v2327
    %v2664 = vpack.c.b16 %v2335, %v2328
    %v2665 = vpack.c.b16 %v2336, %v2329
    %v2666 = vpack.c.b16 %v2344, %v2337
    %v2667 = vpack.c.b16 %v2345, %v2338
    %v2668 = vpack.c.b16 %v2346, %v2339
    %v2669 = vpack.c.b16 %v2347, %v2340
    %v2670 = vpack.c.b16 %v2348, %v2341
    %v2671 = vpack.c.b16 %v2349, %v2342
    %v2672 = vpack.c.b16 %v2350, %v2343
    %v2673 = vpack.c.b16 %v2358, %v2351
    %v2674 = vpack.c.b16 %v2359, %v2352
    %v2675 = vpack.c.b16 %v2360, %v2353
    %v2676 = vpack.c.b16 %v2361, %v2354
    %v2677 = vpack.c.b16 %v2362, %v2355
    %v2678 = vpack.c.b16 %v2363, %v2356
    %v2679 = vpack.c.b16 %v2364, %v2357
    %v2680 = vpack.c.b16 %v2372, %v2365
    %v2681 = vpack.c.b16 %v2373, %v2366
    %v2682 = vpack.c.b16 %v2374, %v2367
    %v2683 = vpack.c.b16 %v2375, %v2368
    %v2684 = vpack.c.b16 %v2376, %v2369
    %v2685 = vpack.c.b16 %v2377, %v2370
    %v2686 = vpack.c.b16 %v2378, %v2371
    %v2687 = vpack.c.b16 %v2386, %v2379
    %v2688 = vpack.c.b16 %v2387, %v2380
    %v2689 = vpack.c.b16 %v2388, %v2381
    %v2690 = vpack.c.b16 %v2389, %v2382
    %v2691 = vpack.c.b16 %v2390, %v2383
    %v2692 = vpack.c.b16 %v2391, %v2384
    %v2693 = vpack.c.b16 %v2392, %v2385
    %v2694 = vpack.c.b16 %v2400, %v2393
    %v2695 = vpack.c.b16 %v2401, %v2394
    %v2696 = vpack.c.b16 %v2402, %v2395
    %v2697 = vpack.c.b16 %v2403, %v2396
    %v2698 = vpack.c.b16 %v2404, %v2397
    %v2699 = vpack.c.b16 %v2405, %v2398
    %v2700 = vpack.c.b16 %v2406, %v2399
    %v2701 = vpack.c.b16 %v2414, %v2407
    %v2702 = vpack.c.b16 %v2415, %v2408
    %v2703 = vpack.c.b16 %v2416, %v2409
    %v2704 = vpack.c.b16 %v2417, %v2410
    %v2705 = vpack.c.b16 %v2418, %v2411
    %v2706 = vpack.c.b16 %v2419, %v2412
    %v2707 = vpack.c.b16 %v2420, %v2413
    %v2708 = vpack.c.b16 %v2428, %v2421
    %v2709 = vpack.c.b16 %v2429, %v2422
    %v2710 = vpack.c.b16 %v2430, %v2423
    %v2711 = vpack.c.b16 %v2431, %v2424
    %v2712 = vpack.c.b16 %v2432, %v2425
    %v2713 = vpack.c.b16 %v2433, %v2426
    %v2714 = vpack.c.b16 %v2434, %v2427
    %v2715 = vpack.c.b16 %v2442, %v2435
    %v2716 = vpack.c.b16 %v2443, %v2436
    %v2717 = vpack.c.b16 %v2444, %v2437
    %v2718 = vpack.c.b16 %v2445, %v2438
    %v2719 = vpack.c.b16 %v2446, %v2439
    %v2720 = vpack.c.b16 %v2447, %v2440
    %v2721 = vpack.c.b16 %v2448, %v2441
    %v2722 = vpack.c.b16 %v2456, %v2449
    %v2723 = vpack.c.b16 %v2457, %v2450
    %v2724 = vpack.c.b16 %v2458, %v2451
    %v2725 = vpack.c.b16 %v2459, %v2452
    %v2726 = vpack.c.b16 %v2460, %v2453
    %v2727 = vpack.c.b16 %v2461, %v2454
    %v2728 = vpack.c.b16 %v2462, %v2455
    %v2729 = vpack.c.b16 %v2470, %v2463
    %v2730 = vpack.c.b16 %v2471, %v2464
    %v2731 = vpack.c.b16 %v2472, %v2465
    %v2732 = vpack.c.b16 %v2473, %v2466
    %v2733 = vpack.c.b16 %v2474, %v2467
    %v2734 = vpack.c.b16 %v2475, %v2468
    %v2735 = vpack.c.b16 %v2476, %v2469
    %v2736 = vpack.c.b16 %v2484, %v2477
    %v2737 = vpack.c.b16 %v2485, %v2478
    %v2738 = vpack.c.b16 %v2486, %v2479
    %v2739 = vpack.c.b16 %v2487, %v2480
    %v2740 = vpack.c.b16 %v2488, %v2481
    %v2741 = vpack.c.b16 %v2489, %v2482
    %v2742 = vpack.c.b16 %v2490, %v2483
    %v2743 = vpack.c.b16 %v2498, %v2491
    %v2744 = vpack.c.b16 %v2499, %v2492
    %v2745 = vpack.c.b16 %v2500, %v2493
    %v2746 = vpack.c.b16 %v2501, %v2494
    %v2747 = vpack.c.b16 %v2502, %v2495
    %v2748 = vpack.c.b16 %v2503, %v2496
    %v2749 = vpack.c.b16 %v2504, %v2497
    %v2750 = vpack.c.b16 %v2512, %v2505
    %v2751 = vpack.c.b16 %v2513, %v2506
    %v2752 = vpack.c.b16 %v2514, %v2507
    %v2753 = vpack.c.b16 %v2515, %v2508
    %v2754 = vpack.c.b16 %v2516, %v2509
    %v2755 = vpack.c.b16 %v2517, %v2510
    %v2756 = vpack.c.b16 %v2518, %v2511
    %v2757 = vpack.c.b16 %v2526, %v2519
    %v2758 = vpack.c.b16 %v2527, %v2520
    %v2759 = vpack.c.b16 %v2528, %v2521
    %v2760 = vpack.c.b16 %v2529, %v2522
    %v2761 = vpack.c.b16 %v2530, %v2523
    %v2762 = vpack.c.b16 %v2531, %v2524
    %v2763 = vpack.c.b16 %v2532, %v2525
    %v2764 = vpack.c.b16 %v2540, %v2533
    %v2765 = vpack.c.b16 %v2541, %v2534
    %v2766 = vpack.c.b16 %v2542, %v2535
    %v2767 = vpack.c.b16 %v2543, %v2536
    %v2768 = vpack.c.b16 %v2544, %v2537
    %v2769 = vpack.c.b16 %v2545, %v2538
    %v2770 = vpack.c.b16 %v2546, %v2539
    %2995 = vmatprep.subr.bf16.mxu0 %v2548
    %2996 = vmatpush1.bf16.msra.mxu0 %v2547
    %2997 = vmatprep.subr.bf16.mxu0 %v2555
    %2998 = vmatpush1.bf16.msra.mxu0 %v2554
    %2999 = vmatprep.subr.bf16.mxu0 %v2562
    %3000 = vmatpush1.bf16.msra.mxu0 %v2561
    %3001 = vmatprep.subr.bf16.mxu0 %v2569
    %3002 = vmatpush1.bf16.msra.mxu0 %v2568
    %3003 = vmatprep.subr.bf16.mxu0 %v2576
    %3004 = vmatpush1.bf16.msra.mxu0 %v2575
    %3005 = vmatprep.subr.bf16.mxu0 %v2583
    %3006 = vmatpush1.bf16.msra.mxu0 %v2582
    %3007 = vmatprep.subr.bf16.mxu0 %v2590
    %3008 = vmatpush1.bf16.msra.mxu0 %v2589
    %3009 = vmatprep.subr.bf16.mxu0 %v2597
    %3010 = vmatpush1.bf16.msra.mxu0 %v2596
    %3011 = vmatprep.subr.bf16.mxu0 %v2604
    %3012 = vmatpush1.bf16.msra.mxu0 %v2603
    %3013 = vmatprep.subr.bf16.mxu0 %v2611
    %3014 = vmatpush1.bf16.msra.mxu0 %v2610
    %3015 = vmatprep.subr.bf16.mxu0 %v2618
    %3016 = vmatpush1.bf16.msra.mxu0 %v2617
    %3017 = vmatprep.subr.bf16.mxu0 %v2625
    %3018 = vmatpush1.bf16.msra.mxu0 %v2624
    %3019 = vmatprep.subr.bf16.mxu0 %v2632
    %3020 = vmatpush1.bf16.msra.mxu0 %v2631
    %3021 = vmatprep.subr.bf16.mxu0 %v2639
    %3022 = vmatpush1.bf16.msra.mxu0 %v2638
    %3023 = vmatprep.subr.bf16.mxu0 %v2646
    %3024 = vmatpush1.bf16.msra.mxu0 %v2645
    %3025 = vmatprep.subr.bf16.mxu0 %v2653
    %3026 = vmatpush1.bf16.msra.mxu0 %v2652
    %3027 = vmatprep.mubr.bf16.mxu0 %v1547
    %3028 = vmatmul.mubr.bf16.gmra.mrb[0].mxu0 %v1546
    %v3029 = vpop.f32.mrb[0].mxu0
    %v3030 = vadd.f32 %v1811, %v3029
    %v3031 = vpop.f32.mrb[0].mxu0
    %v3032 = vadd.f32 %v1815, %v3031
    %v3033 = vpop.f32.mrb[0].mxu0
    %v3034 = vadd.f32 %v1811, %v3033
    %v3035 = vpop.f32.mrb[0].mxu0
    %v3036 = vadd.f32 %v1815, %v3035
    %3037 = vdwg.mxu0
    %3038 = vmatprep.subr.bf16.mxu0 %v2660
    %3039 = vmatpush1.bf16.msra.mxu0 %v2659
    %3040 = vmatprep.subr.bf16.mxu0 %v2667
    %3041 = vmatpush1.bf16.msra.mxu0 %v2666
    %3042 = vmatprep.subr.bf16.mxu0 %v2674
    %3043 = vmatpush1.bf16.msra.mxu0 %v2673
    %3044 = vmatprep.subr.bf16.mxu0 %v2681
    %3045 = vmatpush1.bf16.msra.mxu0 %v2680
    %3046 = vmatprep.subr.bf16.mxu0 %v2688
    %3047 = vmatpush1.bf16.msra.mxu0 %v2687
    %3048 = vmatprep.subr.bf16.mxu0 %v2695
    %3049 = vmatpush1.bf16.msra.mxu0 %v2694
    %3050 = vmatprep.subr.bf16.mxu0 %v2702
    %3051 = vmatpush1.bf16.msra.mxu0 %v2701
    %3052 = vmatprep.subr.bf16.mxu0 %v2709
    %3053 = vmatpush1.bf16.msra.mxu0 %v2708
    %3054 = vmatprep.subr.bf16.mxu0 %v2716
    %3055 = vmatpush1.bf16.msra.mxu0 %v2715
    %3056 = vmatprep.subr.bf16.mxu0 %v2723
    %3057 = vmatpush1.bf16.msra.mxu0 %v2722
    %3058 = vmatprep.subr.bf16.mxu0 %v2730
    %3059 = vmatpush1.bf16.msra.mxu0 %v2729
    %3060 = vmatprep.subr.bf16.mxu0 %v2737
    %3061 = vmatpush1.bf16.msra.mxu0 %v2736
    %3062 = vmatprep.subr.bf16.mxu0 %v2744
    %3063 = vmatpush1.bf16.msra.mxu0 %v2743
    %3064 = vmatprep.subr.bf16.mxu0 %v2751
    %3065 = vmatpush1.bf16.msra.mxu0 %v2750
    %3066 = vmatprep.subr.bf16.mxu0 %v2758
    %3067 = vmatpush1.bf16.msra.mxu0 %v2757
    %3068 = vmatprep.subr.bf16.mxu0 %v2765
    %3069 = vmatpush1.bf16.msra.mxu0 %v2764
    %3070 = vmatprep.mubr.bf16.mxu0 %v1549
    %3071 = vmatmul.mubr.bf16.gmra.mrb[0].mxu0 %v1548
    %v3072 = vpop.f32.mrb[0].mxu0
    %v3073 = vadd.f32 %v3030, %v3072
    %v3074 = vpop.f32.mrb[0].mxu0
    %v3075 = vadd.f32 %v3032, %v3074
    %v3076 = vpop.f32.mrb[0].mxu0
    %v3077 = vadd.f32 %v3034, %v3076
    %v3078 = vpop.f32.mrb[0].mxu0
    %v3079 = vadd.f32 %v3036, %v3078
    %3080 = vdwg.mxu0
    %3081 = vmatprep.subr.bf16.mxu0 %v2550
    %3082 = vmatpush1.bf16.msra.mxu0 %v2549
    %3083 = vmatprep.subr.bf16.mxu0 %v2557
    %3084 = vmatpush1.bf16.msra.mxu0 %v2556
    %3085 = vmatprep.subr.bf16.mxu0 %v2564
    %3086 = vmatpush1.bf16.msra.mxu0 %v2563
    %3087 = vmatprep.subr.bf16.mxu0 %v2571
    %3088 = vmatpush1.bf16.msra.mxu0 %v2570
    %3089 = vmatprep.subr.bf16.mxu0 %v2578
    %3090 = vmatpush1.bf16.msra.mxu0 %v2577
    %3091 = vmatprep.subr.bf16.mxu0 %v2585
    %3092 = vmatpush1.bf16.msra.mxu0 %v2584
    %3093 = vmatprep.subr.bf16.mxu0 %v2592
    %3094 = vmatpush1.bf16.msra.mxu0 %v2591
    %3095 = vmatprep.subr.bf16.mxu0 %v2599
    %3096 = vmatpush1.bf16.msra.mxu0 %v2598
    %3097 = vmatprep.subr.bf16.mxu0 %v2606
    %3098 = vmatpush1.bf16.msra.mxu0 %v2605
    %3099 = vmatprep.subr.bf16.mxu0 %v2613
    %3100 = vmatpush1.bf16.msra.mxu0 %v2612
    %3101 = vmatprep.subr.bf16.mxu0 %v2620
    %3102 = vmatpush1.bf16.msra.mxu0 %v2619
    %3103 = vmatprep.subr.bf16.mxu0 %v2627
    %3104 = vmatpush1.bf16.msra.mxu0 %v2626
    %3105 = vmatprep.subr.bf16.mxu0 %v2634
    %3106 = vmatpush1.bf16.msra.mxu0 %v2633
    %3107 = vmatprep.subr.bf16.mxu0 %v2641
    %3108 = vmatpush1.bf16.msra.mxu0 %v2640
    %3109 = vmatprep.subr.bf16.mxu0 %v2648
    %3110 = vmatpush1.bf16.msra.mxu0 %v2647
    %3111 = vmatprep.subr.bf16.mxu0 %v2655
    %3112 = vmatpush1.bf16.msra.mxu0 %v2654
    %3113 = vmatprep.mubr.bf16.mxu0 %v1547
    %3114 = vmatmul.mubr.bf16.gmra.mrb[0].mxu0 %v1546
    %v3115 = vpop.f32.mrb[0].mxu0
    %v3116 = vadd.f32 %v1819, %v3115
    %v3117 = vpop.f32.mrb[0].mxu0
    %v3118 = vadd.f32 %v1823, %v3117
    %v3119 = vpop.f32.mrb[0].mxu0
    %v3120 = vadd.f32 %v1819, %v3119
    %v3121 = vpop.f32.mrb[0].mxu0
    %v3122 = vadd.f32 %v1823, %v3121
    %3123 = vdwg.mxu0
    %3124 = vmatprep.subr.bf16.mxu0 %v2662
    %3125 = vmatpush1.bf16.msra.mxu0 %v2661
    %3126 = vmatprep.subr.bf16.mxu0 %v2669
    %3127 = vmatpush1.bf16.msra.mxu0 %v2668
    %3128 = vmatprep.subr.bf16.mxu0 %v2676
    %3129 = vmatpush1.bf16.msra.mxu0 %v2675
    %3130 = vmatprep.subr.bf16.mxu0 %v2683
    %3131 = vmatpush1.bf16.msra.mxu0 %v2682
    %3132 = vmatprep.subr.bf16.mxu0 %v2690
    %3133 = vmatpush1.bf16.msra.mxu0 %v2689
    %3134 = vmatprep.subr.bf16.mxu0 %v2697
    %3135 = vmatpush1.bf16.msra.mxu0 %v2696
    %3136 = vmatprep.subr.bf16.mxu0 %v2704
    %3137 = vmatpush1.bf16.msra.mxu0 %v2703
    %3138 = vmatprep.subr.bf16.mxu0 %v2711
    %3139 = vmatpush1.bf16.msra.mxu0 %v2710
    %3140 = vmatprep.subr.bf16.mxu0 %v2718
    %3141 = vmatpush1.bf16.msra.mxu0 %v2717
    %3142 = vmatprep.subr.bf16.mxu0 %v2725
    %3143 = vmatpush1.bf16.msra.mxu0 %v2724
    %3144 = vmatprep.subr.bf16.mxu0 %v2732
    %3145 = vmatpush1.bf16.msra.mxu0 %v2731
    %3146 = vmatprep.subr.bf16.mxu0 %v2739
    %3147 = vmatpush1.bf16.msra.mxu0 %v2738
    %3148 = vmatprep.subr.bf16.mxu0 %v2746
    %3149 = vmatpush1.bf16.msra.mxu0 %v2745
    %3150 = vmatprep.subr.bf16.mxu0 %v2753
    %3151 = vmatpush1.bf16.msra.mxu0 %v2752
    %3152 = vmatprep.subr.bf16.mxu0 %v2760
    %3153 = vmatpush1.bf16.msra.mxu0 %v2759
    %3154 = vmatprep.subr.bf16.mxu0 %v2767
    %3155 = vmatpush1.bf16.msra.mxu0 %v2766
    %3156 = vmatprep.mubr.bf16.mxu0 %v1549
    %3157 = vmatmul.mubr.bf16.gmra.mrb[0].mxu0 %v1548
    %v3158 = vpop.f32.mrb[0].mxu0
    %v3159 = vadd.f32 %v3116, %v3158
    %v3160 = vpop.f32.mrb[0].mxu0
    %v3161 = vadd.f32 %v3118, %v3160
    %v3162 = vpop.f32.mrb[0].mxu0
    %v3163 = vadd.f32 %v3120, %v3162
    %v3164 = vpop.f32.mrb[0].mxu0
    %v3165 = vadd.f32 %v3122, %v3164
    %3166 = vdwg.mxu0
    %3167 = vmatprep.subr.bf16.mxu0 %v2552
    %3168 = vmatpush1.bf16.msra.mxu0 %v2551
    %3169 = vmatprep.subr.bf16.mxu0 %v2559
    %3170 = vmatpush1.bf16.msra.mxu0 %v2558
    %3171 = vmatprep.subr.bf16.mxu0 %v2566
    %3172 = vmatpush1.bf16.msra.mxu0 %v2565
    %3173 = vmatprep.subr.bf16.mxu0 %v2573
    %3174 = vmatpush1.bf16.msra.mxu0 %v2572
    %3175 = vmatprep.subr.bf16.mxu0 %v2580
    %3176 = vmatpush1.bf16.msra.mxu0 %v2579
    %3177 = vmatprep.subr.bf16.mxu0 %v2587
    %3178 = vmatpush1.bf16.msra.mxu0 %v2586
    %3179 = vmatprep.subr.bf16.mxu0 %v2594
    %3180 = vmatpush1.bf16.msra.mxu0 %v2593
    %3181 = vmatprep.subr.bf16.mxu0 %v2601
    %3182 = vmatpush1.bf16.msra.mxu0 %v2600
    %3183 = vmatprep.subr.bf16.mxu0 %v2608
    %3184 = vmatpush1.bf16.msra.mxu0 %v2607
    %3185 = vmatprep.subr.bf16.mxu0 %v2615
    %3186 = vmatpush1.bf16.msra.mxu0 %v2614
    %3187 = vmatprep.subr.bf16.mxu0 %v2622
    %3188 = vmatpush1.bf16.msra.mxu0 %v2621
    %3189 = vmatprep.subr.bf16.mxu0 %v2629
    %3190 = vmatpush1.bf16.msra.mxu0 %v2628
    %3191 = vmatprep.subr.bf16.mxu0 %v2636
    %3192 = vmatpush1.bf16.msra.mxu0 %v2635
    %3193 = vmatprep.subr.bf16.mxu0 %v2643
    %3194 = vmatpush1.bf16.msra.mxu0 %v2642
    %3195 = vmatprep.subr.bf16.mxu0 %v2650
    %3196 = vmatpush1.bf16.msra.mxu0 %v2649
    %3197 = vmatprep.subr.bf16.mxu0 %v2657
    %3198 = vmatpush1.bf16.msra.mxu0 %v2656
    %3199 = vmatprep.mubr.bf16.mxu0 %v1547
    %3200 = vmatmul.mubr.bf16.gmra.mrb[0].mxu0 %v1546
    %v3201 = vpop.f32.mrb[0].mxu0
    %v3202 = vadd.f32 %v1827, %v3201
    %v3203 = vpop.f32.mrb[0].mxu0
    %v3204 = vadd.f32 %v1831, %v3203
    %v3205 = vpop.f32.mrb[0].mxu0
    %v3206 = vadd.f32 %v1827, %v3205
    %v3207 = vpop.f32.mrb[0].mxu0
    %v3208 = vadd.f32 %v1831, %v3207
    %3209 = vdwg.mxu0
    %3210 = vmatprep.subr.bf16.mxu0 %v2664
    %3211 = vmatpush1.bf16.msra.mxu0 %v2663
    %3212 = vmatprep.subr.bf16.mxu0 %v2671
    %3213 = vmatpush1.bf16.msra.mxu0 %v2670
    %3214 = vmatprep.subr.bf16.mxu0 %v2678
    %3215 = vmatpush1.bf16.msra.mxu0 %v2677
    %3216 = vmatprep.subr.bf16.mxu0 %v2685
    %3217 = vmatpush1.bf16.msra.mxu0 %v2684
    %3218 = vmatprep.subr.bf16.mxu0 %v2692
    %3219 = vmatpush1.bf16.msra.mxu0 %v2691
    %3220 = vmatprep.subr.bf16.mxu0 %v2699
    %3221 = vmatpush1.bf16.msra.mxu0 %v2698
    %3222 = vmatprep.subr.bf16.mxu0 %v2706
    %3223 = vmatpush1.bf16.msra.mxu0 %v2705
    %3224 = vmatprep.subr.bf16.mxu0 %v2713
    %3225 = vmatpush1.bf16.msra.mxu0 %v2712
    %3226 = vmatprep.subr.bf16.mxu0 %v2720
    %3227 = vmatpush1.bf16.msra.mxu0 %v2719
    %3228 = vmatprep.subr.bf16.mxu0 %v2727
    %3229 = vmatpush1.bf16.msra.mxu0 %v2726
    %3230 = vmatprep.subr.bf16.mxu0 %v2734
    %3231 = vmatpush1.bf16.msra.mxu0 %v2733
    %3232 = vmatprep.subr.bf16.mxu0 %v2741
    %3233 = vmatpush1.bf16.msra.mxu0 %v2740
    %3234 = vmatprep.subr.bf16.mxu0 %v2748
    %3235 = vmatpush1.bf16.msra.mxu0 %v2747
    %3236 = vmatprep.subr.bf16.mxu0 %v2755
    %3237 = vmatpush1.bf16.msra.mxu0 %v2754
    %3238 = vmatprep.subr.bf16.mxu0 %v2762
    %3239 = vmatpush1.bf16.msra.mxu0 %v2761
    %3240 = vmatprep.subr.bf16.mxu0 %v2769
    %3241 = vmatpush1.bf16.msra.mxu0 %v2768
    %3242 = vmatprep.mubr.bf16.mxu0 %v1549
    %3243 = vmatmul.mubr.bf16.gmra.mrb[0].mxu0 %v1548
    %v3244 = vpop.f32.mrb[0].mxu0
    %v3245 = vadd.f32 %v3202, %v3244
    %v3246 = vpop.f32.mrb[0].mxu0
    %v3247 = vadd.f32 %v3204, %v3246
    %v3248 = vpop.f32.mrb[0].mxu0
    %v3249 = vadd.f32 %v3206, %v3248
    %v3250 = vpop.f32.mrb[0].mxu0
    %v3251 = vadd.f32 %v3208, %v3250
    %3252 = vdwg.mxu0
    %3253 = vmatprep.subr.bf16.mxu0 0
    %3254 = vmatpush1.bf16.msra.mxu0 %v2553
    %3255 = vmatprep.subr.bf16.mxu0 0
    %3256 = vmatpush1.bf16.msra.mxu0 %v2560
    %3257 = vmatprep.subr.bf16.mxu0 0
    %3258 = vmatpush1.bf16.msra.mxu0 %v2567
    %3259 = vmatprep.subr.bf16.mxu0 0
    %3260 = vmatpush1.bf16.msra.mxu0 %v2574
    %3261 = vmatprep.subr.bf16.mxu0 0
    %3262 = vmatpush1.bf16.msra.mxu0 %v2581
    %3263 = vmatprep.subr.bf16.mxu0 0
    %3264 = vmatpush1.bf16.msra.mxu0 %v2588
    %3265 = vmatprep.subr.bf16.mxu0 0
    %3266 = vmatpush1.bf16.msra.mxu0 %v2595
    %3267 = vmatprep.subr.bf16.mxu0 0
    %3268 = vmatpush1.bf16.msra.mxu0 %v2602
    %3269 = vmatprep.subr.bf16.mxu0 0
    %3270 = vmatpush1.bf16.msra.mxu0 %v2609
    %3271 = vmatprep.subr.bf16.mxu0 0
    %3272 = vmatpush1.bf16.msra.mxu0 %v2616
    %3273 = vmatprep.subr.bf16.mxu0 0
    %3274 = vmatpush1.bf16.msra.mxu0 %v2623
    %3275 = vmatprep.subr.bf16.mxu0 0
    %3276 = vmatpush1.bf16.msra.mxu0 %v2630
    %3277 = vmatprep.subr.bf16.mxu0 0
    %3278 = vmatpush1.bf16.msra.mxu0 %v2637
    %3279 = vmatprep.subr.bf16.mxu0 0
    %3280 = vmatpush1.bf16.msra.mxu0 %v2644
    %3281 = vmatprep.subr.bf16.mxu0 0
    %3282 = vmatpush1.bf16.msra.mxu0 %v2651
    %3283 = vmatprep.subr.bf16.mxu0 0
    %3284 = vmatpush1.bf16.msra.mxu0 %v2658
    %3285 = vmatprep.mubr.bf16.mxu0 %v1547
    %3286 = vmatmul.mubr.bf16.gmra.mrb[0].mxu0 %v1546
    %v3287 = vpop.f32.mrb[0].mxu0
    %v3288 = vadd.f32 %v1835, %v3287
    %v3289 = vpop.f32.mrb[0].mxu0
    %v3290 = vpop.f32.mrb[0].mxu0
    %v3291 = vadd.f32 %v1835, %v3290
    %v3292 = vpop.f32.mrb[0].mxu0
    %3293 = vdwg.mxu0
    %3294 = vmatprep.subr.bf16.mxu0 0
    %3295 = vmatpush1.bf16.msra.mxu0 %v2665
    %3296 = vmatprep.subr.bf16.mxu0 0
    %3297 = vmatpush1.bf16.msra.mxu0 %v2672
    %3298 = vmatprep.subr.bf16.mxu0 0
    %3299 = vmatpush1.bf16.msra.mxu0 %v2679
    %3300 = vmatprep.subr.bf16.mxu0 0
    %3301 = vmatpush1.bf16.msra.mxu0 %v2686
    %3302 = vmatprep.subr.bf16.mxu0 0
    %3303 = vmatpush1.bf16.msra.mxu0 %v2693
    %3304 = vmatprep.subr.bf16.mxu0 0
    %3305 = vmatpush1.bf16.msra.mxu0 %v2700
    %3306 = vmatprep.subr.bf16.mxu0 0
    %3307 = vmatpush1.bf16.msra.mxu0 %v2707
    %3308 = vmatprep.subr.bf16.mxu0 0
    %3309 = vmatpush1.bf16.msra.mxu0 %v2714
    %3310 = vmatprep.subr.bf16.mxu0 0
    %3311 = vmatpush1.bf16.msra.mxu0 %v2721
    %3312 = vmatprep.subr.bf16.mxu0 0
    %3313 = vmatpush1.bf16.msra.mxu0 %v2728
    %3314 = vmatprep.subr.bf16.mxu0 0
    %3315 = vmatpush1.bf16.msra.mxu0 %v2735
    %3316 = vmatprep.subr.bf16.mxu0 0
    %3317 = vmatpush1.bf16.msra.mxu0 %v2742
    %3318 = vmatprep.subr.bf16.mxu0 0
    %3319 = vmatpush1.bf16.msra.mxu0 %v2749
    %3320 = vmatprep.subr.bf16.mxu0 0
    %3321 = vmatpush1.bf16.msra.mxu0 %v2756
    %3322 = vmatprep.subr.bf16.mxu0 0
    %3323 = vmatpush1.bf16.msra.mxu0 %v2763
    %3324 = vmatprep.subr.bf16.mxu0 0
    %3325 = vmatpush1.bf16.msra.mxu0 %v2770
    %3326 = vmatprep.mubr.bf16.mxu0 %v1549
    %3327 = vmatmul.mubr.bf16.gmra.mrb[0].mxu0 %v1548
    %v3328 = vpop.f32.mrb[0].mxu0
    %v3329 = vadd.f32 %v3288, %v3328
    %v3330 = vpop.f32.mrb[0].mxu0
    %v3331 = vpop.f32.mrb[0].mxu0
    %v3332 = vadd.f32 %v3291, %v3331
    %v3333 = vpop.f32.mrb[0].mxu0
    %3334 = vdwg.mxu0
    %v3335 = vxor.u32 %v3073, 2147483648
    %v3336 = vxor.u32 %v3075, 2147483648
    %v3337 = vxor.u32 %v3159, 2147483648
    %v3338 = vxor.u32 %v3161, 2147483648
    %v3339 = vxor.u32 %v3245, 2147483648
    %v3340 = vxor.u32 %v3247, 2147483648
    %v3341 = vxor.u32 %v3329, 2147483648
    %v3342 = vxor.u32 %v3077, 2147483648
    %v3343 = vxor.u32 %v3079, 2147483648
    %v3344 = vxor.u32 %v3163, 2147483648
    %v3345 = vxor.u32 %v3165, 2147483648
    %v3346 = vxor.u32 %v3249, 2147483648
    %v3347 = vxor.u32 %v3251, 2147483648
    %v3348 = vxor.u32 %v3332, 2147483648
    %v3349 = vmul.f32 %v3335, 1.442695
    %v3350 = vpow.pop %v3349
    %v3351 = vmul.f32 %v3336, 1.442695
    %v3352 = vpow.pop %v3351
    %v3353 = vmul.f32 %v3337, 1.442695
    %v3354 = vpow.pop %v3353
    %v3355 = vmul.f32 %v3338, 1.442695
    %v3356 = vpow.pop %v3355
    %v3357 = vmul.f32 %v3339, 1.442695
    %v3358 = vpow.pop %v3357
    %v3359 = vmul.f32 %v3340, 1.442695
    %v3360 = vpow.pop %v3359
    %v3361 = vmul.f32 %v3341, 1.442695
    %v3362 = vpow.pop %v3361
    %v3363 = vmul.f32 %v3342, 1.442695
    %v3364 = vpow.pop %v3363
    %v3365 = vmul.f32 %v3343, 1.442695
    %v3366 = vpow.pop %v3365
    %v3367 = vmul.f32 %v3344, 1.442695
    %v3368 = vpow.pop %v3367
    %v3369 = vmul.f32 %v3345, 1.442695
    %v3370 = vpow.pop %v3369
    %v3371 = vmul.f32 %v3346, 1.442695
    %v3372 = vpow.pop %v3371
    %v3373 = vmul.f32 %v3347, 1.442695
    %v3374 = vpow.pop %v3373
    %v3375 = vmul.f32 %v3348, 1.442695
    %v3376 = vpow.pop %v3375
    %v3377 = vadd.f32 %v3350, 1.0
    %v3378 = vadd.f32 %v3352, 1.0
    %v3379 = vadd.f32 %v3354, 1.0
    %v3380 = vadd.f32 %v3356, 1.0
    %v3381 = vadd.f32 %v3358, 1.0
    %v3382 = vadd.f32 %v3360, 1.0
    %v3383 = vadd.f32 %v3362, 1.0
    %v3384 = vadd.f32 %v3364, 1.0
    %v3385 = vadd.f32 %v3366, 1.0
    %v3386 = vadd.f32 %v3368, 1.0
    %v3387 = vadd.f32 %v3370, 1.0
    %v3388 = vadd.f32 %v3372, 1.0
    %v3389 = vadd.f32 %v3374, 1.0
    %v3390 = vadd.f32 %v3376, 1.0
    %v3391 = vrcp.pop %v3377
    %v3392 = vmul.f32 1.0, %v3391
    %v3393 = vrcp.pop %v3378
    %v3394 = vmul.f32 1.0, %v3393
    %v3395 = vrcp.pop %v3379
    %v3396 = vmul.f32 1.0, %v3395
    %v3397 = vrcp.pop %v3380
    %v3398 = vmul.f32 1.0, %v3397
    %v3399 = vrcp.pop %v3381
    %v3400 = vmul.f32 1.0, %v3399
    %v3401 = vrcp.pop %v3382
    %v3402 = vmul.f32 1.0, %v3401
    %v3403 = vrcp.pop %v3383
    %v3404 = vmul.f32 1.0, %v3403
    %v3405 = vrcp.pop %v3384
    %v3406 = vmul.f32 1.0, %v3405
    %v3407 = vrcp.pop %v3385
    %v3408 = vmul.f32 1.0, %v3407
    %v3409 = vrcp.pop %v3386
    %v3410 = vmul.f32 1.0, %v3409
    %v3411 = vrcp.pop %v3387
    %v3412 = vmul.f32 1.0, %v3411
    %v3413 = vrcp.pop %v3388
    %v3414 = vmul.f32 1.0, %v3413
    %v3415 = vrcp.pop %v3389
    %v3416 = vmul.f32 1.0, %v3415
    %v3417 = vrcp.pop %v3390
    %v3418 = vmul.f32 1.0, %v3417
    %3419 = vst [vmem:[#allocation2] sm:$0xff] %v3392
    %3420 = vst [vmem:[#allocation2 + $0x8] sm:$0xff] %v3394
    %3421 = vst [vmem:[#allocation2 + $0x10] sm:$0xff] %v3396
    %3422 = vst [vmem:[#allocation2 + $0x18] sm:$0xff] %v3398
    %3423 = vst [vmem:[#allocation2 + $0x20] sm:$0xff] %v3400
    %3424 = vst [vmem:[#allocation2 + $0x28] sm:$0xff] %v3402
    %3425 = vst [vmem:[#allocation2 + $0x30] sm:$0xff] %v3404
    %3426 = vst [vmem:[#allocation2 + $0x38] sm:$0xff] %v3406
    %3427 = vst [vmem:[#allocation2 + $0x40] sm:$0xff] %v3408
    %3428 = vst [vmem:[#allocation2 + $0x48] sm:$0xff] %v3410
    %3429 = vst [vmem:[#allocation2 + $0x50] sm:$0xff] %v3412
    %3430 = vst [vmem:[#allocation2 + $0x58] sm:$0xff] %v3414
    %3431 = vst [vmem:[#allocation2 + $0x60] sm:$0xff] %v3416
    %3432 = vst [vmem:[#allocation2 + $0x68] sm:$0xff] %v3418
    // Predicated region
    $region30: #{decoder_forward.1} parent=1 // pred_check
      _
    $region31: #{decoder_forward.1} parent=1 // pred_check_branch
      %3434 = sbr.rel (0) target = $region33
    $region32: #{decoder_forward.1} parent=1 // pred_region
      %s3436 = ssub.s32 1792, 1792
      %3437 = vsyncadd [#allocation3], %s3436
      %s3438 = sshll.u32 [#allocation2], 4
      %s3439 = int_to_ptr.vmem [resolvable:$true] %s3438
      %3444 = dma.vmem_to_hbm [thread:$0]  %s3439, 1792, %s7, [#allocation3], 896, 896, 56
    $region33: #{decoder_forward.1} parent=1 // pred_fallthru
      _
    // Predicated region
    $region34: #{decoder_forward.1} parent=1 // pred_check
      _
    $region35: #{decoder_forward.1} parent=1 // pred_check_branch
      %3446 = sbr.rel (0) target = $region37
    $region36: #{decoder_forward.1} parent=1 // pred_region
      %3447 = dma.done [#allocation3], 1792
    $region37: #{decoder_forward.1} parent=1 // pred_fallthru
      _
    %3448 = vsyncpa [#allocation3], 1

</llo_original>
